<compile_context>
chip_gen: v7x
topology: tpu7x:2x2x1
jax: 0.10.0
libtpu: 0.0.40
codegen_flags: <defaults>
</compile_context>

<pallas_src>
import functools
import math

import numpy as np
import jax
import jax.numpy as jnp
from jax.experimental import pallas as pl
from jax.experimental.pallas import tpu as pltpu

MAX_ITER_SINK = 6
LN_EPS = 1e-5
SINK_EPS = 1.0  # SinkhornDistance(eps=1, max_iter=MAX_ITER_SINK)


def _exp_dtype_for_device():
    """bf16 exp on v6e/v7x (bf16 EUP); f32 on older chips (no bf16 EUP/VPU)."""
    try:
        kind = jax.devices()[0].device_kind.lower()
    except Exception:
        return jnp.float32
    for old in ("v2", "v3", "v4", "v5"):
        if old in kind:
            return jnp.float32
    return jnp.bfloat16


# ---------------------------------------------------------------------------
# Kernel: one (batch row, head) pair per grid step.
#   refs: x, ln_w, ln_b, wa_h, ba_h, wp_h, bp  |  out  |  xn scratch, acc scratch
# ---------------------------------------------------------------------------
def fused_head_kernel(x_ref, g_ref, beta_ref, wa_ref, ba_ref, wp_ref, bp_ref,
                      o_ref, xn_ref, acc_ref, *, exp_dtype):
    h = pl.program_id(1)
    T = x_ref.shape[1]
    hd = wp_ref.shape[1]

    # ---- once per batch row: LayerNorm(n_embd+1) -> bf16 scratch; zero acc ----
    @pl.when(h == 0)
    def _():
        x = x_ref[0].astype(jnp.float32)                      # (T, C1)
        mean = jnp.mean(x, axis=-1, keepdims=True)
        xc = x - mean
        var = jnp.mean(xc * xc, axis=-1, keepdims=True)
        xn = xc * jax.lax.rsqrt(var + LN_EPS) * g_ref[...] + beta_ref[...]
        xn_ref[...] = xn.astype(jnp.bfloat16)
        acc_ref[...] = jnp.zeros_like(acc_ref)

    # ---- this head's qkv: (T, C1) @ (C1, 3*hd); bf16 operands, f32 accumulate --
    qkv = jnp.dot(xn_ref[...], wa_ref[0],
                  preferred_element_type=jnp.float32) + ba_ref[0]   # (T, 3*hd) f32
    q = qkv[:, :hd].astype(jnp.bfloat16)        # 1/sqrt(hd) pre-folded into W_q, b_q
    k = qkv[:, hd:2 * hd].astype(jnp.bfloat16)
    v = qkv[:, 2 * hd:]                          # f32 until scaled by exp(v) below

    # ---- causal softmax over keys ---------------------------------------------
    row = jax.lax.broadcasted_iota(jnp.int32, (T, T), 0)
    col = jax.lax.broadcasted_iota(jnp.int32, (T, T), 1)
    s = jax.lax.dot_general(q, k, (((1,), (1,)), ((), ())),
                            preferred_element_type=jnp.float32)     # (T, T) f32
    s = jnp.where(col <= row, s, -1e30)          # == masked_fill(tril == 0, -inf)
    m = jnp.max(s, axis=-1, keepdims=True)
    p = jnp.exp((s - m).astype(exp_dtype))                           # (T, T)
    denom = jnp.sum(p, axis=-1, keepdims=True, dtype=jnp.float32)    # (T, 1) f32
    att = p * (1.0 / denom).astype(exp_dtype)                        # (T, T)

    # ---- SinkhornDistance(eps=1, 6 iters), multiplicative form -----------------
    #   exp(u) <- marg / (E @ exp(v));  exp(v) <- marg / (E^T @ exp(u)),  E = exp(att)
    # Row/col sums are bf16 MXU matvecs (f32 acc); duals stay f32 columns -> no
    # transposes and no (T,T) VPU/XLU work inside the iteration.
    E = jnp.exp(att).astype(jnp.bfloat16)                            # only (T,T) kept live
    marg = 1.0 / T + 1e-8                                            # exp(log(1/T + 1e-8))
    ev = jnp.ones((T, 1), jnp.float32)                               # exp(v), v = 0
    ev_b = ev.astype(jnp.bfloat16)
    for _ in range(MAX_ITER_SINK):
        rowsum = jax.lax.dot_general(E, ev_b, (((1,), (0,)), ((), ())),
                                     preferred_element_type=jnp.float32)   # (T, 1)
        eu = marg / rowsum
        colsum = jax.lax.dot_general(E, eu.astype(jnp.bfloat16),
                                     (((0,), (0,)), ((), ())),
                                     preferred_element_type=jnp.float32)   # (T, 1)
        ev = marg / colsum
        ev_b = ev.astype(jnp.bfloat16)

    # y_h = (pi * T) @ v,  pi = diag(eu) E diag(ev)  -> never materialize pi.
    vv = (ev * v).astype(jnp.bfloat16)                                # (T, hd)
    yh = (eu * float(T)) * jnp.dot(E, vv, preferred_element_type=jnp.float32)

    # ---- accumulate this head's c_proj partial: (T, hd) @ (hd, C) --------------
    acc_ref[...] += jnp.dot(yh.astype(jnp.bfloat16), wp_ref[0],
                            preferred_element_type=jnp.float32)

    # ---- last head: add bias, one lane-dense (T, C) store ----------------------
    @pl.when(h == pl.num_programs(1) - 1)
    def _():
        o_ref[0] = (acc_ref[...] + bp_ref[...]).astype(o_ref.dtype)


# ---------------------------------------------------------------------------
# Parameter re-layout (shared by the wrapper and the dtype-matched reference):
#   c_attn W  (C1, 3C) -> (n_head, C1, 3*hd) per-head [q|k|v] slabs, bf16,
#                         with 1/sqrt(hd) folded into the q columns.
#   c_attn b  (3C,)    -> (n_head, 1, 3*hd) f32 (q part scaled likewise).
#   c_proj W  (C, C)   -> (n_head, hd, C) bf16.
# ---------------------------------------------------------------------------
def _prepare_params(params, n_head):
    ln_w, ln_b, w_attn, b_attn, w_proj, b_proj = params
    C1, threeC = w_attn.shape
    C = threeC // 3
    hd = C // n_head
    scale = 1.0 / math.sqrt(hd)

    wa = w_attn.reshape(C1, 3, n_head, hd).transpose(2, 0, 1, 3)   # (nh, C1, 3, hd)
    wa = wa.at[:, :, 0, :].multiply(scale)                          # fold scale into q
    wa = wa.reshape(n_head, C1, 3 * hd).astype(jnp.bfloat16)

    ba = b_attn.reshape(3, n_head, hd).transpose(1, 0, 2)           # (nh, 3, hd)
    ba = ba.at[:, 0, :].multiply(scale)
    ba = ba.reshape(n_head, 1, 3 * hd).astype(jnp.float32)

    wp = w_proj.reshape(n_head, hd, C).astype(jnp.bfloat16)         # (nh, hd, C)

    return (ln_w.reshape(1, C1).astype(jnp.float32),
            ln_b.reshape(1, C1).astype(jnp.float32),
            wa, ba, wp,
            b_proj.reshape(1, C).astype(jnp.float32))


# ---------------------------------------------------------------------------
# Wrapper
# ---------------------------------------------------------------------------
def causal_self_attention_after_ln(x, params, n_head, exp_dtype=None):
    B, T, C1 = x.shape
    C = C1 - 1
    assert C % n_head == 0
    hd = C // n_head
    if exp_dtype is None:
        exp_dtype = _exp_dtype_for_device()

    ln_w, ln_b, wa, ba, wp, bp = _prepare_params(params, n_head)
    kernel = functools.partial(fused_head_kernel, exp_dtype=exp_dtype)

    return pl.pallas_call(
        kernel,
        out_shape=jax.ShapeDtypeStruct((B, T, C), jnp.float32),
        grid=(B, n_head),
        in_specs=[
            pl.BlockSpec((1, T, C1), lambda b, h: (b, 0, 0)),       # x (fetched once per row)
            pl.BlockSpec((1, C1), lambda b, h: (0, 0)),             # ln weight (resident)
            pl.BlockSpec((1, C1), lambda b, h: (0, 0)),             # ln bias   (resident)
            pl.BlockSpec((1, C1, 3 * hd), lambda b, h: (h, 0, 0)),  # c_attn W slab, head h (bf16)
            pl.BlockSpec((1, 1, 3 * hd), lambda b, h: (h, 0, 0)),   # c_attn b slab, head h (f32)
            pl.BlockSpec((1, hd, C), lambda b, h: (h, 0, 0)),       # c_proj W rows, head h (bf16)
            pl.BlockSpec((1, C), lambda b, h: (0, 0)),              # c_proj bias (resident)
        ],
        out_specs=pl.BlockSpec((1, T, C), lambda b, h: (b, 0, 0)),  # resident across heads
        scratch_shapes=[
            pltpu.VMEM((T, C1), jnp.bfloat16),    # LayerNorm'd activations (per batch row)
            pltpu.VMEM((T, C), jnp.float32),      # c_proj partial accumulator
        ],
        compiler_params=pltpu.CompilerParams(
            dimension_semantics=("parallel", "arbitrary"),
            # 32 MiB: safe headroom on v7x (64 MiB physical); raise toward 64-96 MiB
            # on v5e/v6e only if adopting bigger per-step blocks.
            vmem_limit_bytes=32 * 1024 * 1024,
        ),
    )(x, ln_w, ln_b, wa, ba, wp, bp)


# ---------------------------------------------------------------------------
# References.
#   reference_f32:     module-faithful f32 math (log-domain Sinkhorn).
#   reference_matched: mirrors the kernel's numerics (bf16 MXU operands, bf16 exp,
#                      MXU Sinkhorn matvecs, diag identity) -> tight plumbing check.
# ---------------------------------------------------------------------------
def reference_f32(x, params, n_head):
    ln_w, ln_b, w_attn, b_attn, w_proj, b_proj = params
    B, T, C1 = x.shape
    C = C1 - 1
    hd = C // n_head

    mean = x.mean(-1, keepdims=True)
    var = ((x - mean) ** 2).mean(-1, keepdims=True)
    xn = (x - mean) / jnp.sqrt(var + LN_EPS) * ln_w + ln_b
    qkv = jnp.matmul(xn, w_attn) + b_attn
    q, k, v = jnp.split(qkv, 3, axis=-1)

    def heads(t):
        return t.reshape(B, T, n_head, hd).transpose(0, 2, 1, 3)

    q, k, v = heads(q), heads(k), heads(v)
    att = jnp.matmul(q, k.swapaxes(-1, -2)) / math.sqrt(hd)
    mask = jnp.tril(jnp.ones((T, T), bool))
    att = jnp.where(mask, att, -jnp.inf)
    att = jax.nn.softmax(att, axis=-1)

    log_marg = jnp.log(1.0 / T + 1e-8)
    u = jnp.zeros((B, n_head, T, 1), jnp.float32)
    vd = jnp.zeros((B, n_head, 1, T), jnp.float32)
    for _ in range(MAX_ITER_SINK):
        m = (att + u + vd) / SINK_EPS
        u = SINK_EPS * (log_marg - jax.nn.logsumexp(m, axis=-1, keepdims=True)) + u
        m = (att + u + vd) / SINK_EPS
        vd = SINK_EPS * (log_marg - jax.nn.logsumexp(m, axis=-2, keepdims=True)) + vd
    pi = jnp.exp((att + u + vd) / SINK_EPS) * T
    y = jnp.matmul(pi, v)
    y = y.transpose(0, 2, 1, 3).reshape(B, T, C)
    return jnp.matmul(y, w_proj) + b_proj


def reference_matched(x, params, n_head, exp_dtype):
    ln_w, ln_b, wa, ba, wp, bp = _prepare_params(params, n_head)
    B, T, C1 = x.shape
    C = C1 - 1
    hd = C // n_head
    marg = 1.0 / T + 1e-8

    mean = x.mean(-1, keepdims=True)
    xc = x - mean
    var = (xc * xc).mean(-1, keepdims=True)
    xn = (xc * jax.lax.rsqrt(var + LN_EPS) * ln_w + ln_b).astype(jnp.bfloat16)

    out = jnp.zeros((B, T, C), jnp.float32)
    for b in range(B):
        acc = jnp.zeros((T, C), jnp.float32)
        for h in range(n_head):
            qkv = jnp.dot(xn[b], wa[h], preferred_element_type=jnp.float32) + ba[h]
            q = qkv[:, :hd].astype(jnp.bfloat16)
            k = qkv[:, hd:2 * hd].astype(jnp.bfloat16)
            v = qkv[:, 2 * hd:]
            s = jax.lax.dot_general(q, k, (((1,), (1,)), ((), ())),
                                    preferred_element_type=jnp.float32)
            s = jnp.where(jnp.tril(jnp.ones((T, T), bool)), s, -1e30)
            m = jnp.max(s, axis=-1, keepdims=True)
            p = jnp.exp((s - m).astype(exp_dtype))
            denom = jnp.sum(p, axis=-1, keepdims=True, dtype=jnp.float32)
            att = p * (1.0 / denom).astype(exp_dtype)
            E = jnp.exp(att).astype(jnp.bfloat16)
            ev = jnp.ones((T, 1), jnp.float32)
            ev_b = ev.astype(jnp.bfloat16)
            for _ in range(MAX_ITER_SINK):
                rowsum = jax.lax.dot_general(E, ev_b, (((1,), (0,)), ((), ())),
                                             preferred_element_type=jnp.float32)
                eu = marg / rowsum
                colsum = jax.lax.dot_general(E, eu.astype(jnp.bfloat16),
                                             (((0,), (0,)), ((), ())),
                                             preferred_element_type=jnp.float32)
                ev = marg / colsum
                ev_b = ev.astype(jnp.bfloat16)
            vv = (ev * v).astype(jnp.bfloat16)
            yh = (eu * float(T)) * jnp.dot(E, vv, preferred_element_type=jnp.float32)
            acc = acc + jnp.dot(yh.astype(jnp.bfloat16), wp[h],
                                preferred_element_type=jnp.float32)
        out = out.at[b].set(acc + bp)
    return out


# ---------------------------------------------------------------------------
if __name__ == "__main__":
    B, T, n_embd, n_head = 2, 8, 32, 4   # block_size >= T, n_embd % n_head == 0
    C1 = n_embd + 1                      # input feature dim is n_embd + 1

    key = jax.random.PRNGKey(0)
    kx, k1, k2, k3, k4 = jax.random.split(key, 5)
    x = jax.random.normal(kx, (B, T, C1), jnp.float32)

    # Deterministic synthetic parameters (shapes from __init__; ln matches init exactly).
    ln_w = jnp.ones((C1,), jnp.float32)
    ln_b = jnp.zeros((C1,), jnp.float32)
    w_attn = jax.random.normal(k1, (C1, 3 * n_embd), jnp.float32) / math.sqrt(C1)
    b_attn = 0.1 * jax.random.normal(k2, (3 * n_embd,), jnp.float32)
    w_proj = jax.random.normal(k3, (n_embd, n_embd), jnp.float32) / math.sqrt(n_embd)
    b_proj = 0.1 * jax.random.normal(k4, (n_embd,), jnp.float32)
    params = (ln_w, ln_b, w_attn, b_attn, w_proj, b_proj)

    exp_dtype = _exp_dtype_for_device()   # bf16 on v6e/v7x, f32 on v5e and older

    fn = jax.jit(causal_self_attention_after_ln, static_argnums=(2, 3))
    out = jax.block_until_ready(fn(x, params, n_head, exp_dtype))
    assert out.shape == (B, T, n_embd), out.shape

    # Tight check vs a reference that mirrors the kernel's bf16/MXU numerics
    # (validates the grid/BlockSpec plumbing and the weight re-layout).
    ref_m = reference_matched(x, params, n_head, exp_dtype)
    np.testing.assert_allclose(np.asarray(out), np.asarray(ref_m),
                               rtol=3e-2, atol=3e-2)

    # Looser check vs pure-f32 module semantics (tolerance covers the bf16 MXU
    # operands / bf16 exp / bf16 Sinkhorn matvec operands, per review guidance).
    ref_f = reference_f32(x, params, n_head)
    np.testing.assert_allclose(np.asarray(out), np.asarray(ref_f),
                               rtol=2e-1, atol=2e-1)

    print("KERNEL_OK")
</pallas_src>

<mosaic_0001>
module attributes {stable_mosaic.version = 11 : i64} {
  func.func @fused_head_kernel(%arg0: i32, %arg1: i32, %arg2: memref<1x8x33xf32, #tpu.memory_space<vmem>>, %arg3: memref<1x33xf32, #tpu.memory_space<vmem>>, %arg4: memref<1x33xf32, #tpu.memory_space<vmem>>, %arg5: memref<1x33x24xbf16, #tpu.memory_space<vmem>>, %arg6: memref<1x1x24xf32, #tpu.memory_space<vmem>>, %arg7: memref<1x8x32xbf16, #tpu.memory_space<vmem>>, %arg8: memref<1x32xf32, #tpu.memory_space<vmem>>, %arg9: memref<1x8x32xf32, #tpu.memory_space<vmem>>, %arg10: memref<8x33xbf16, #tpu.memory_space<vmem>>, %arg11: memref<8x32xf32, #tpu.memory_space<vmem>>) attributes {dimension_semantics = [#tpu.dimension_semantics<parallel>, #tpu.dimension_semantics<arbitrary>], iteration_bounds = array<i64: 2, 4>, scalar_prefetch = 0 : i64, scratch_operands = 2 : i64, tpu.core_type = #tpu.core_type<tc>, window_params = [{transform_indices = @transform_0, window_bounds = array<i64: 1, 8, 33>}, {pipeline_mode = #tpu.pipeline_mode<synchronous>, transform_indices = @transform_1, window_bounds = array<i64: 1, 33>}, {pipeline_mode = #tpu.pipeline_mode<synchronous>, transform_indices = @transform_2, window_bounds = array<i64: 1, 33>}, {transform_indices = @transform_3, window_bounds = array<i64: 1, 33, 24>}, {transform_indices = @transform_4, window_bounds = array<i64: 1, 1, 24>}, {transform_indices = @transform_5, window_bounds = array<i64: 1, 8, 32>}, {pipeline_mode = #tpu.pipeline_mode<synchronous>, transform_indices = @transform_6, window_bounds = array<i64: 1, 32>}, {transform_indices = @transform_7, window_bounds = array<i64: 1, 8, 32>}]} {
    %c0_i32 = arith.constant 0 : i32
    %0 = arith.cmpi eq, %arg1, %c0_i32 : i32
    %1 = arith.extui %0 : i1 to i32
    %c0_i32_0 = arith.constant 0 : i32
    %2 = arith.cmpi ne, %1, %c0_i32_0 : i32
    scf.if %2 {
      %c0_49 = arith.constant 0 : index
      %c0_50 = arith.constant 0 : index
      %c0_51 = arith.constant 0 : index
      %104 = vector.load %arg2[%c0_49, %c0_50, %c0_51] : memref<1x8x33xf32, #tpu.memory_space<vmem>>, vector<1x8x33xf32>
      %105 = vector.shape_cast %104 : vector<1x8x33xf32> to vector<8x33xf32>
      %cst_52 = arith.constant dense<0.000000e+00> : vector<8xf32>
      %106 = vector.multi_reduction <add>, %105, %cst_52 [1] : vector<8x33xf32> to vector<8xf32>
      %107 = vector.shape_cast %106 : vector<8xf32> to vector<8x1xf32>
      %cst_53 = arith.constant 3.300000e+01 : f32
      %108 = vector.broadcast %cst_53 : f32 to vector<8x1xf32>
      %109 = arith.divf %107, %108 : vector<8x1xf32>
      %110 = vector.broadcast %109 : vector<8x1xf32> to vector<8x33xf32>
      %111 = arith.subf %105, %110 : vector<8x33xf32>
      %112 = arith.mulf %111, %111 : vector<8x33xf32>
      %cst_54 = arith.constant dense<0.000000e+00> : vector<8xf32>
      %113 = vector.multi_reduction <add>, %112, %cst_54 [1] : vector<8x33xf32> to vector<8xf32>
      %114 = vector.shape_cast %113 : vector<8xf32> to vector<8x1xf32>
      %cst_55 = arith.constant 3.300000e+01 : f32
      %115 = vector.broadcast %cst_55 : f32 to vector<8x1xf32>
      %116 = arith.divf %114, %115 : vector<8x1xf32>
      %cst_56 = arith.constant 9.99999974E-6 : f32
      %117 = vector.broadcast %cst_56 : f32 to vector<8x1xf32>
      %118 = arith.addf %116, %117 : vector<8x1xf32>
      %119 = math.rsqrt %118 : vector<8x1xf32>
      %120 = vector.broadcast %119 : vector<8x1xf32> to vector<8x33xf32>
      %121 = arith.mulf %111, %120 : vector<8x33xf32>
      %c0_57 = arith.constant 0 : index
      %c0_58 = arith.constant 0 : index
      %122 = vector.load %arg3[%c0_57, %c0_58] : memref<1x33xf32, #tpu.memory_space<vmem>>, vector<1x33xf32>
      %123 = vector.broadcast %122 : vector<1x33xf32> to vector<8x33xf32>
      %124 = arith.mulf %121, %123 : vector<8x33xf32>
      %c0_59 = arith.constant 0 : index
      %c0_60 = arith.constant 0 : index
      %125 = vector.load %arg4[%c0_59, %c0_60] : memref<1x33xf32, #tpu.memory_space<vmem>>, vector<1x33xf32>
      %126 = vector.broadcast %125 : vector<1x33xf32> to vector<8x33xf32>
      %127 = arith.addf %124, %126 : vector<8x33xf32>
      %128 = arith.truncf %127 : vector<8x33xf32> to vector<8x33xbf16>
      %c0_61 = arith.constant 0 : index
      %c0_62 = arith.constant 0 : index
      %129 = vector.load %arg10[%c0_61, %c0_62] : memref<8x33xbf16, #tpu.memory_space<vmem>>, vector<8x33xbf16>
      tpu.vector_store %arg10[%c0_61, %c0_62], %128 {strides = array<i32>} : memref<8x33xbf16, #tpu.memory_space<vmem>>, vector<8x33xbf16>,
      %cst_63 = arith.constant 0.000000e+00 : f32
      %130 = vector.broadcast %cst_63 : f32 to vector<8x32xf32>
      %c0_64 = arith.constant 0 : index
      %c0_65 = arith.constant 0 : index
      %131 = vector.load %arg11[%c0_64, %c0_65] : memref<8x32xf32, #tpu.memory_space<vmem>>, vector<8x32xf32>
      tpu.vector_store %arg11[%c0_64, %c0_65], %130 {strides = array<i32>} : memref<8x32xf32, #tpu.memory_space<vmem>>, vector<8x32xf32>,
    } else {
    }
    %c0 = arith.constant 0 : index
    %c0_1 = arith.constant 0 : index
    %3 = vector.load %arg10[%c0, %c0_1] : memref<8x33xbf16, #tpu.memory_space<vmem>>, vector<8x33xbf16>
    %c0_2 = arith.constant 0 : index
    %c0_3 = arith.constant 0 : index
    %c0_4 = arith.constant 0 : index
    %4 = vector.load %arg5[%c0_2, %c0_3, %c0_4] : memref<1x33x24xbf16, #tpu.memory_space<vmem>>, vector<1x33x24xbf16>
    %5 = vector.shape_cast %4 : vector<1x33x24xbf16> to vector<33x24xbf16>
    %cst = arith.constant dense<0.000000e+00> : vector<8x24xf32>
    %6 = tpu.matmul %3, %5, %cst {dimension_numbers = #tpu.dot_dimension_numbers<[1], [0], [0], [1], [0, 0, 1, 1], [], []>} : vector<8x33xbf16>, vector<33x24xbf16>, vector<8x24xf32> -> vector<8x24xf32>
    %c0_5 = arith.constant 0 : index
    %c0_6 = arith.constant 0 : index
    %c0_7 = arith.constant 0 : index
    %7 = vector.load %arg6[%c0_5, %c0_6, %c0_7] : memref<1x1x24xf32, #tpu.memory_space<vmem>>, vector<1x1x24xf32>
    %8 = vector.shape_cast %7 : vector<1x1x24xf32> to vector<1x24xf32>
    %9 = vector.broadcast %8 : vector<1x24xf32> to vector<8x24xf32>
    %10 = arith.addf %6, %9 : vector<8x24xf32>
    %11 = vector.extract_strided_slice %10 {offsets = [0, 0], sizes = [8, 8], strides = [1, 1]} : vector<8x24xf32> to vector<8x8xf32>
    %12 = arith.truncf %11 : vector<8x8xf32> to vector<8x8xbf16>
    %13 = vector.extract_strided_slice %10 {offsets = [0, 8], sizes = [8, 8], strides = [1, 1]} : vector<8x24xf32> to vector<8x8xf32>
    %14 = arith.truncf %13 : vector<8x8xf32> to vector<8x8xbf16>
    %15 = vector.extract_strided_slice %10 {offsets = [0, 16], sizes = [8, 8], strides = [1, 1]} : vector<8x24xf32> to vector<8x8xf32>
    %16 = tpu.iota {dimensions = array<i32: 0>} : vector<8x8xi32>
    %17 = tpu.iota {dimensions = array<i32: 1>} : vector<8x8xi32>
    %cst_8 = arith.constant dense<0.000000e+00> : vector<8x8xf32>
    %18 = tpu.matmul %12, %14, %cst_8 {dimension_numbers = #tpu.dot_dimension_numbers<[1], [1], [0], [0], [0, 0, 1, 0], [], []>} : vector<8x8xbf16>, vector<8x8xbf16>, vector<8x8xf32> -> vector<8x8xf32>
    %19 = arith.cmpi sle, %17, %16 : vector<8x8xi32>
    %cst_9 = arith.constant -1.000000e+30 : f32
    %20 = vector.broadcast %cst_9 : f32 to vector<8x8xf32>
    %21 = arith.select %19, %18, %20 : vector<8x8xi1>, vector<8x8xf32>
    %cst_10 = arith.constant dense<0xFF800000> : vector<8xf32>
    %22 = vector.multi_reduction <maximumf>, %21, %cst_10 [1] : vector<8x8xf32> to vector<8xf32>
    %23 = vector.shape_cast %22 : vector<8xf32> to vector<8x1xf32>
    %24 = vector.broadcast %23 : vector<8x1xf32> to vector<8x8xf32>
    %25 = arith.subf %21, %24 : vector<8x8xf32>
    %26 = arith.truncf %25 : vector<8x8xf32> to vector<8x8xbf16>
    %27 = math.exp %26 : vector<8x8xbf16>
    %28 = arith.extf %27 : vector<8x8xbf16> to vector<8x8xf32>
    %cst_11 = arith.constant dense<0.000000e+00> : vector<8xf32>
    %29 = vector.multi_reduction <add>, %28, %cst_11 [1] : vector<8x8xf32> to vector<8xf32>
    %30 = vector.shape_cast %29 : vector<8xf32> to vector<8x1xf32>
    %cst_12 = arith.constant 1.000000e+00 : f32
    %31 = vector.broadcast %cst_12 : f32 to vector<8x1xf32>
    %32 = arith.divf %31, %30 : vector<8x1xf32>
    %33 = arith.truncf %32 : vector<8x1xf32> to vector<8x1xbf16>
    %34 = vector.broadcast %33 : vector<8x1xbf16> to vector<8x8xbf16>
    %35 = arith.mulf %27, %34 : vector<8x8xbf16>
    %36 = math.exp %35 : vector<8x8xbf16>
    %cst_13 = arith.constant 1.000000e+00 : f32
    %37 = vector.broadcast %cst_13 : f32 to vector<8x1xf32>
    %38 = arith.truncf %37 : vector<8x1xf32> to vector<8x1xbf16>
    %cst_14 = arith.constant dense<0.000000e+00> : vector<8x1xf32>
    %39 = tpu.matmul %36, %38, %cst_14 {dimension_numbers = #tpu.dot_dimension_numbers<[1], [0], [0], [1], [0, 0, 1, 1], [], []>} : vector<8x8xbf16>, vector<8x1xbf16>, vector<8x1xf32> -> vector<8x1xf32>
    %cst_15 = arith.constant 0.125000015 : f32
    %40 = vector.broadcast %cst_15 : f32 to vector<8x1xf32>
    %41 = arith.divf %40, %39 : vector<8x1xf32>
    %42 = arith.truncf %41 : vector<8x1xf32> to vector<8x1xbf16>
    %cst_16 = arith.constant dense<0.000000e+00> : vector<8x1xf32>
    %43 = tpu.matmul %36, %42, %cst_16 {dimension_numbers = #tpu.dot_dimension_numbers<[0], [0], [1], [1], [0, 1, 1, 1], [], []>} : vector<8x8xbf16>, vector<8x1xbf16>, vector<8x1xf32> -> vector<8x1xf32>
    %cst_17 = arith.constant 0.125000015 : f32
    %44 = vector.broadcast %cst_17 : f32 to vector<8x1xf32>
    %45 = arith.divf %44, %43 : vector<8x1xf32>
    %46 = arith.truncf %45 : vector<8x1xf32> to vector<8x1xbf16>
    %cst_18 = arith.constant dense<0.000000e+00> : vector<8x1xf32>
    %47 = tpu.matmul %36, %46, %cst_18 {dimension_numbers = #tpu.dot_dimension_numbers<[1], [0], [0], [1], [0, 0, 1, 1], [], []>} : vector<8x8xbf16>, vector<8x1xbf16>, vector<8x1xf32> -> vector<8x1xf32>
    %cst_19 = arith.constant 0.125000015 : f32
    %48 = vector.broadcast %cst_19 : f32 to vector<8x1xf32>
    %49 = arith.divf %48, %47 : vector<8x1xf32>
    %50 = arith.truncf %49 : vector<8x1xf32> to vector<8x1xbf16>
    %cst_20 = arith.constant dense<0.000000e+00> : vector<8x1xf32>
    %51 = tpu.matmul %36, %50, %cst_20 {dimension_numbers = #tpu.dot_dimension_numbers<[0], [0], [1], [1], [0, 1, 1, 1], [], []>} : vector<8x8xbf16>, vector<8x1xbf16>, vector<8x1xf32> -> vector<8x1xf32>
    %cst_21 = arith.constant 0.125000015 : f32
    %52 = vector.broadcast %cst_21 : f32 to vector<8x1xf32>
    %53 = arith.divf %52, %51 : vector<8x1xf32>
    %54 = arith.truncf %53 : vector<8x1xf32> to vector<8x1xbf16>
    %cst_22 = arith.constant dense<0.000000e+00> : vector<8x1xf32>
    %55 = tpu.matmul %36, %54, %cst_22 {dimension_numbers = #tpu.dot_dimension_numbers<[1], [0], [0], [1], [0, 0, 1, 1], [], []>} : vector<8x8xbf16>, vector<8x1xbf16>, vector<8x1xf32> -> vector<8x1xf32>
    %cst_23 = arith.constant 0.125000015 : f32
    %56 = vector.broadcast %cst_23 : f32 to vector<8x1xf32>
    %57 = arith.divf %56, %55 : vector<8x1xf32>
    %58 = arith.truncf %57 : vector<8x1xf32> to vector<8x1xbf16>
    %cst_24 = arith.constant dense<0.000000e+00> : vector<8x1xf32>
    %59 = tpu.matmul %36, %58, %cst_24 {dimension_numbers = #tpu.dot_dimension_numbers<[0], [0], [1], [1], [0, 1, 1, 1], [], []>} : vector<8x8xbf16>, vector<8x1xbf16>, vector<8x1xf32> -> vector<8x1xf32>
    %cst_25 = arith.constant 0.125000015 : f32
    %60 = vector.broadcast %cst_25 : f32 to vector<8x1xf32>
    %61 = arith.divf %60, %59 : vector<8x1xf32>
    %62 = arith.truncf %61 : vector<8x1xf32> to vector<8x1xbf16>
    %cst_26 = arith.constant dense<0.000000e+00> : vector<8x1xf32>
    %63 = tpu.matmul %36, %62, %cst_26 {dimension_numbers = #tpu.dot_dimension_numbers<[1], [0], [0], [1], [0, 0, 1, 1], [], []>} : vector<8x8xbf16>, vector<8x1xbf16>, vector<8x1xf32> -> vector<8x1xf32>
    %cst_27 = arith.constant 0.125000015 : f32
    %64 = vector.broadcast %cst_27 : f32 to vector<8x1xf32>
    %65 = arith.divf %64, %63 : vector<8x1xf32>
    %66 = arith.truncf %65 : vector<8x1xf32> to vector<8x1xbf16>
    %cst_28 = arith.constant dense<0.000000e+00> : vector<8x1xf32>
    %67 = tpu.matmul %36, %66, %cst_28 {dimension_numbers = #tpu.dot_dimension_numbers<[0], [0], [1], [1], [0, 1, 1, 1], [], []>} : vector<8x8xbf16>, vector<8x1xbf16>, vector<8x1xf32> -> vector<8x1xf32>
    %cst_29 = arith.constant 0.125000015 : f32
    %68 = vector.broadcast %cst_29 : f32 to vector<8x1xf32>
    %69 = arith.divf %68, %67 : vector<8x1xf32>
    %70 = arith.truncf %69 : vector<8x1xf32> to vector<8x1xbf16>
    %cst_30 = arith.constant dense<0.000000e+00> : vector<8x1xf32>
    %71 = tpu.matmul %36, %70, %cst_30 {dimension_numbers = #tpu.dot_dimension_numbers<[1], [0], [0], [1], [0, 0, 1, 1], [], []>} : vector<8x8xbf16>, vector<8x1xbf16>, vector<8x1xf32> -> vector<8x1xf32>
    %cst_31 = arith.constant 0.125000015 : f32
    %72 = vector.broadcast %cst_31 : f32 to vector<8x1xf32>
    %73 = arith.divf %72, %71 : vector<8x1xf32>
    %74 = arith.truncf %73 : vector<8x1xf32> to vector<8x1xbf16>
    %cst_32 = arith.constant dense<0.000000e+00> : vector<8x1xf32>
    %75 = tpu.matmul %36, %74, %cst_32 {dimension_numbers = #tpu.dot_dimension_numbers<[0], [0], [1], [1], [0, 1, 1, 1], [], []>} : vector<8x8xbf16>, vector<8x1xbf16>, vector<8x1xf32> -> vector<8x1xf32>
    %cst_33 = arith.constant 0.125000015 : f32
    %76 = vector.broadcast %cst_33 : f32 to vector<8x1xf32>
    %77 = arith.divf %76, %75 : vector<8x1xf32>
    %78 = arith.truncf %77 : vector<8x1xf32> to vector<8x1xbf16>
    %cst_34 = arith.constant dense<0.000000e+00> : vector<8x1xf32>
    %79 = tpu.matmul %36, %78, %cst_34 {dimension_numbers = #tpu.dot_dimension_numbers<[1], [0], [0], [1], [0, 0, 1, 1], [], []>} : vector<8x8xbf16>, vector<8x1xbf16>, vector<8x1xf32> -> vector<8x1xf32>
    %cst_35 = arith.constant 0.125000015 : f32
    %80 = vector.broadcast %cst_35 : f32 to vector<8x1xf32>
    %81 = arith.divf %80, %79 : vector<8x1xf32>
    %82 = arith.truncf %81 : vector<8x1xf32> to vector<8x1xbf16>
    %cst_36 = arith.constant dense<0.000000e+00> : vector<8x1xf32>
    %83 = tpu.matmul %36, %82, %cst_36 {dimension_numbers = #tpu.dot_dimension_numbers<[0], [0], [1], [1], [0, 1, 1, 1], [], []>} : vector<8x8xbf16>, vector<8x1xbf16>, vector<8x1xf32> -> vector<8x1xf32>
    %cst_37 = arith.constant 0.125000015 : f32
    %84 = vector.broadcast %cst_37 : f32 to vector<8x1xf32>
    %85 = arith.divf %84, %83 : vector<8x1xf32>
    %86 = vector.broadcast %85 : vector<8x1xf32> to vector<8x8xf32>
    %87 = arith.mulf %86, %15 : vector<8x8xf32>
    %88 = arith.truncf %87 : vector<8x8xf32> to vector<8x8xbf16>
    %cst_38 = arith.constant 8.000000e+00 : f32
    %89 = vector.broadcast %cst_38 : f32 to vector<8x1xf32>
    %90 = arith.mulf %81, %89 : vector<8x1xf32>
    %cst_39 = arith.constant dense<0.000000e+00> : vector<8x8xf32>
    %91 = tpu.matmul %36, %88, %cst_39 {dimension_numbers = #tpu.dot_dimension_numbers<[1], [0], [0], [1], [0, 0, 1, 1], [], []>} : vector<8x8xbf16>, vector<8x8xbf16>, vector<8x8xf32> -> vector<8x8xf32>
    %92 = vector.broadcast %90 : vector<8x1xf32> to vector<8x8xf32>
    %93 = arith.mulf %92, %91 : vector<8x8xf32>
    %c0_40 = arith.constant 0 : index
    %c0_41 = arith.constant 0 : index
    %94 = vector.load %arg11[%c0_40, %c0_41] : memref<8x32xf32, #tpu.memory_space<vmem>>, vector<8x32xf32>
    %95 = arith.truncf %93 : vector<8x8xf32> to vector<8x8xbf16>
    %c0_42 = arith.constant 0 : index
    %c0_43 = arith.constant 0 : index
    %c0_44 = arith.constant 0 : index
    %96 = vector.load %arg7[%c0_42, %c0_43, %c0_44] : memref<1x8x32xbf16, #tpu.memory_space<vmem>>, vector<1x8x32xbf16>
    %97 = vector.shape_cast %96 : vector<1x8x32xbf16> to vector<8x32xbf16>
    %cst_45 = arith.constant dense<0.000000e+00> : vector<8x32xf32>
    %98 = tpu.matmul %95, %97, %cst_45 {dimension_numbers = #tpu.dot_dimension_numbers<[1], [0], [0], [1], [0, 0, 1, 1], [], []>} : vector<8x8xbf16>, vector<8x32xbf16>, vector<8x32xf32> -> vector<8x32xf32>
    %99 = arith.addf %94, %98 : vector<8x32xf32>
    %c0_46 = arith.constant 0 : index
    %c0_47 = arith.constant 0 : index
    %100 = vector.load %arg11[%c0_46, %c0_47] : memref<8x32xf32, #tpu.memory_space<vmem>>, vector<8x32xf32>
    tpu.vector_store %arg11[%c0_46, %c0_47], %99 {strides = array<i32>} : memref<8x32xf32, #tpu.memory_space<vmem>>, vector<8x32xf32>,
    %c3_i32 = arith.constant 3 : i32
    %101 = arith.cmpi eq, %arg1, %c3_i32 : i32
    %102 = arith.extui %101 : i1 to i32
    %c0_i32_48 = arith.constant 0 : i32
    %103 = arith.cmpi ne, %102, %c0_i32_48 : i32
    scf.if %103 {
      %c0_49 = arith.constant 0 : index
      %c0_50 = arith.constant 0 : index
      %104 = vector.load %arg11[%c0_49, %c0_50] : memref<8x32xf32, #tpu.memory_space<vmem>>, vector<8x32xf32>
      %c0_51 = arith.constant 0 : index
      %c0_52 = arith.constant 0 : index
      %105 = vector.load %arg8[%c0_51, %c0_52] : memref<1x32xf32, #tpu.memory_space<vmem>>, vector<1x32xf32>
      %106 = vector.broadcast %105 : vector<1x32xf32> to vector<8x32xf32>
      %107 = arith.addf %104, %106 : vector<8x32xf32>
      %c0_53 = arith.constant 0 : index
      %c0_54 = arith.constant 0 : index
      %c0_55 = arith.constant 0 : index
      %108 = vector.load %arg9[%c0_53, %c0_54, %c0_55] : memref<1x8x32xf32, #tpu.memory_space<vmem>>, vector<1x8x32xf32>
      %109 = vector.shape_cast %108 : vector<1x8x32xf32> to vector<8x32xf32>
      %110 = vector.shape_cast %107 : vector<8x32xf32> to vector<1x8x32xf32>
      tpu.vector_store %arg9[%c0_53, %c0_54, %c0_55], %110 {strides = array<i32>} : memref<1x8x32xf32, #tpu.memory_space<vmem>>, vector<1x8x32xf32>,
    } else {
    }
    return
  }
  func.func @transform_0(%arg0: i32, %arg1: i32) -> (i32, i32, i32) {
    %c0_i32 = arith.constant 0 : i32
    %c0_i32_0 = arith.constant 0 : i32
    %c0_i32_1 = arith.constant 0 : i32
    return %arg0, %c0_i32, %c0_i32_0 : i32, i32, i32
  }
  func.func @transform_1(%arg0: i32, %arg1: i32) -> (i32, i32) {
    %c0_i32 = arith.constant 0 : i32
    %c0_i32_0 = arith.constant 0 : i32
    %c0_i32_1 = arith.constant 0 : i32
    return %c0_i32, %c0_i32_0 : i32, i32
  }
  func.func @transform_2(%arg0: i32, %arg1: i32) -> (i32, i32) {
    %c0_i32 = arith.constant 0 : i32
    %c0_i32_0 = arith.constant 0 : i32
    %c0_i32_1 = arith.constant 0 : i32
    return %c0_i32, %c0_i32_0 : i32, i32
  }
  func.func @transform_3(%arg0: i32, %arg1: i32) -> (i32, i32, i32) {
    %c0_i32 = arith.constant 0 : i32
    %c0_i32_0 = arith.constant 0 : i32
    %c0_i32_1 = arith.constant 0 : i32
    return %arg1, %c0_i32, %c0_i32_0 : i32, i32, i32
  }
  func.func @transform_4(%arg0: i32, %arg1: i32) -> (i32, i32, i32) {
    %c0_i32 = arith.constant 0 : i32
    %c0_i32_0 = arith.constant 0 : i32
    %c0_i32_1 = arith.constant 0 : i32
    return %arg1, %c0_i32, %c0_i32_0 : i32, i32, i32
  }
  func.func @transform_5(%arg0: i32, %arg1: i32) -> (i32, i32, i32) {
    %c0_i32 = arith.constant 0 : i32
    %c0_i32_0 = arith.constant 0 : i32
    %c0_i32_1 = arith.constant 0 : i32
    return %arg1, %c0_i32, %c0_i32_0 : i32, i32, i32
  }
  func.func @transform_6(%arg0: i32, %arg1: i32) -> (i32, i32) {
    %c0_i32 = arith.constant 0 : i32
    %c0_i32_0 = arith.constant 0 : i32
    %c0_i32_1 = arith.constant 0 : i32
    return %c0_i32, %c0_i32_0 : i32, i32
  }
  func.func @transform_7(%arg0: i32, %arg1: i32) -> (i32, i32, i32) {
    %c0_i32 = arith.constant 0 : i32
    %c0_i32_0 = arith.constant 0 : i32
    %c0_i32_1 = arith.constant 0 : i32
    return %arg0, %c0_i32, %c0_i32_0 : i32, i32, i32
  }
}

</mosaic_0001>

<llo_original>
// kernel: causal_self_attention_after_ln.1
$region0: #{causal_self_attention_after_ln.1}
  #allocation0 [shape = 'u32[]', space=smem, size = 0x4, offset = 0x4, fixed_abs, tag = 'smem constant byte address 0x4 - core index']
  #allocation1 [shape = 'u32[144,128]{1,0:T(1,128)}', space=vmem, size = 0x12000, scoped, tag = 'internal scratch']
  #allocation2 [shape = 'bf16[8,33]{1,0:T(8,128)(2,1)}', space=vmem, size = 0x800, scoped, tag = 'scratch operand']
  #allocation3 [shape = 'f32[8,32]{1,0:T(8,128)}', space=vmem, size = 0x1000, scoped, tag = 'scratch operand']
  %s0 = inlined_call_operand.vmem [shape: f32[2,8,33], index: 0, kind: input, shape index: {}]
  %s1 = inlined_call_operand.vmem [shape: f32[1,33], index: 1, kind: input, shape index: {}]
  %s2 = inlined_call_operand.vmem [shape: f32[1,33], index: 2, kind: input, shape index: {}]
  %s3 = inlined_call_operand.vmem [shape: bf16[4,33,24], index: 3, kind: input, shape index: {}]
  %s4 = inlined_call_operand.vmem [shape: f32[4,1,24], index: 4, kind: input, shape index: {}]
  %s5 = inlined_call_operand.vmem [shape: bf16[4,8,32], index: 5, kind: input, shape index: {}]
  %s6 = inlined_call_operand.vmem [shape: f32[1,32], index: 6, kind: input, shape index: {}]
  %s7 = inlined_call_operand.hbm [shape: f32[2,8,32], index: 7, kind: output, shape index: {}]
  %s8 = sld [smem:[#allocation0]]
  $region69: #{causal_self_attention_after_ln.1} parent=0
    _
  %s10 = ssub.s32 1, %s8
  %s11 = scalar_select 0, %s10, %s8
  $region1: #{causal_self_attention_after_ln.1} parent=0
    #allocation4 [shape = 'u8[8192]{0}', space=vmem, size = 0x2000, scoped, tag = 'output window, operand 0']
    #allocation5 [shape = 's32[2]{0}', space=sflag, size = 0x8, scoped, tag = 'scoped memory for causal_self_attention_after_ln.1']
    %12 = vsyncpa [#allocation5], 0
    %s13 = scalar_lea.sflag [#allocation5], 1
    %14 = vsyncpa %s13, 0
    loop: start=0, step=1, limit=10
    $region2: #{causal_self_attention_after_ln.1} parent=1 // loop_pre_header
      _
    $region3: #{causal_self_attention_after_ln.1} parent=1 // loop_header
      %s16 = sphi 0, %s20
      %p17 = scmp.ge.s32.totalorder %s16, 10
      %s23 = sphi 0, %s35
      %s24 = sphi 0, %s31
      %s25 = sphi 0, %s23
      %s26 = sphi 0, %s24
      %s27 = sphi 0, %s25
      %s28 = sphi 0, %s26
      %s38 = sphi 0, %s40
      %s41 = sphi 0, %s38
      %s42 = sphi 0, %s41
      %s58 = sphi 0, %s42
      %s62 = sphi 0, %s62
      %s64 = sphi 0, %s62
      %s65 = sphi 0, %s64
      %s79 = sphi 0, %s65
      %s83 = sphi 0, %s83
      %s85 = sphi 0, %s83
      %s86 = sphi 0, %s85
      %s100 = sphi 0, %s86
      %s106 = sphi 0, %s108
      %s109 = sphi 0, %s106
      %s110 = sphi 0, %s109
      %s126 = sphi 0, %s110
      %s132 = sphi 0, %s134
      %s135 = sphi 0, %s132
      %s136 = sphi 0, %s135
      %s152 = sphi 0, %s136
      %s158 = sphi 0, %s160
      %s161 = sphi 0, %s158
      %s162 = sphi 0, %s161
      %s178 = sphi 0, %s162
      %s182 = sphi 0, %s182
      %s184 = sphi 0, %s182
      %s185 = sphi 0, %s184
      %s199 = sphi 0, %s185
      %s205 = sphi 0, %s207
      %s208 = sphi 0, %s205
      %s209 = sphi 0, %s208
      %s225 = sphi 0, %s209
    $region4: #{causal_self_attention_after_ln.1} parent=1 // loop_header_branch
      %19 = sbr.rel (%p17) target = $region8
    $region5: #{causal_self_attention_after_ln.1} parent=1 // loop_body
      %s21 = ssub.s32 %s16, 1
      %s22 = ssub.s32 %s16, 2
      %s29 = sadd.s32 1, %s24
      %p30 = scmp.ge.s32.totalorder %s29, 4
      %s31 = scalar_select %p30, 0, %s29
      %s32 = sadd.s32 1, %s23
      %s33 = scalar_select %p30, %s32, %s23
      %p34 = scmp.ge.s32.totalorder %s33, 2
      %s35 = scalar_select %p34, 0, %s33
      %s36 = ssub.s32 %s23, %s35
      %p37 = scmp.eq.s32.totalorder %s36, 0
      %s39 = sadd.s32 %s38, 1
      %s40 = scalar_select %p37, %s38, %s39
      %p43 = pneg %p37
      %p44 = scmp.eq.s32.totalorder %s16, 7
      %p45 = por %p43, %p44
      %p46 = scmp.ne.s32.totalorder %s38, %s41
      %p47 = scmp.eq.s32.totalorder %s16, 0
      %p48 = por %p46, %p47
      %p49 = scmp.ne.s32.totalorder %s38, %s41
      %p50 = scmp.eq.s32.totalorder %s21, 7
      %p51 = por %p49, %p50
      %p52 = scmp.ne.s32.totalorder %s41, %s42
      %p53 = scmp.eq.s32.totalorder %s21, 0
      %p54 = por %p52, %p53
      %p55 = scmp.ne.s32.totalorder %s41, %s42
      %p56 = scmp.eq.s32.totalorder %s22, 7
      %p57 = por %p55, %p56
      %p59 = scmp.ne.s32.totalorder %s42, %s58
      %p60 = scmp.eq.s32.totalorder %s22, 0
      %p61 = por %p59, %p60
      %s63 = sadd.s32 %s62, 1
      %p66 = scmp.eq.s32.totalorder %s16, 7
      %p67 = scmp.ne.s32.totalorder %s62, %s64
      %p68 = scmp.eq.s32.totalorder %s16, 0
      %p69 = por %p67, %p68
      %p70 = scmp.ne.s32.totalorder %s62, %s64
      %p71 = scmp.eq.s32.totalorder %s21, 7
      %p72 = por %p70, %p71
      %p73 = scmp.ne.s32.totalorder %s64, %s65
      %p74 = scmp.eq.s32.totalorder %s21, 0
      %p75 = por %p73, %p74
      %p76 = scmp.ne.s32.totalorder %s64, %s65
      %p77 = scmp.eq.s32.totalorder %s22, 7
      %p78 = por %p76, %p77
      %p80 = scmp.ne.s32.totalorder %s65, %s79
      %p81 = scmp.eq.s32.totalorder %s22, 0
      %p82 = por %p80, %p81
      %s84 = sadd.s32 %s83, 1
      %p87 = scmp.eq.s32.totalorder %s16, 7
      %p88 = scmp.ne.s32.totalorder %s83, %s85
      %p89 = scmp.eq.s32.totalorder %s16, 0
      %p90 = por %p88, %p89
      %p91 = scmp.ne.s32.totalorder %s83, %s85
      %p92 = scmp.eq.s32.totalorder %s21, 7
      %p93 = por %p91, %p92
      %p94 = scmp.ne.s32.totalorder %s85, %s86
      %p95 = scmp.eq.s32.totalorder %s21, 0
      %p96 = por %p94, %p95
      %p97 = scmp.ne.s32.totalorder %s85, %s86
      %p98 = scmp.eq.s32.totalorder %s22, 7
      %p99 = por %p97, %p98
      %p101 = scmp.ne.s32.totalorder %s86, %s100
      %p102 = scmp.eq.s32.totalorder %s22, 0
      %p103 = por %p101, %p102
      %s104 = ssub.s32 %s24, %s31
      %p105 = scmp.eq.s32.totalorder %s104, 0
      %s107 = sadd.s32 %s106, 1
      %s108 = scalar_select %p105, %s106, %s107
      %p111 = pneg %p105
      %p112 = scmp.eq.s32.totalorder %s16, 7
      %p113 = por %p111, %p112
      %p114 = scmp.ne.s32.totalorder %s106, %s109
      %p115 = scmp.eq.s32.totalorder %s16, 0
      %p116 = por %p114, %p115
      %p117 = scmp.ne.s32.totalorder %s106, %s109
      %p118 = scmp.eq.s32.totalorder %s21, 7
      %p119 = por %p117, %p118
      %p120 = scmp.ne.s32.totalorder %s109, %s110
      %p121 = scmp.eq.s32.totalorder %s21, 0
      %p122 = por %p120, %p121
      %p123 = scmp.ne.s32.totalorder %s109, %s110
      %p124 = scmp.eq.s32.totalorder %s22, 7
      %p125 = por %p123, %p124
      %p127 = scmp.ne.s32.totalorder %s110, %s126
      %p128 = scmp.eq.s32.totalorder %s22, 0
      %p129 = por %p127, %p128
      %s130 = ssub.s32 %s24, %s31
      %p131 = scmp.eq.s32.totalorder %s130, 0
      %s133 = sadd.s32 %s132, 1
      %s134 = scalar_select %p131, %s132, %s133
      %p137 = pneg %p131
      %p138 = scmp.eq.s32.totalorder %s16, 7
      %p139 = por %p137, %p138
      %p140 = scmp.ne.s32.totalorder %s132, %s135
      %p141 = scmp.eq.s32.totalorder %s16, 0
      %p142 = por %p140, %p141
      %p143 = scmp.ne.s32.totalorder %s132, %s135
      %p144 = scmp.eq.s32.totalorder %s21, 7
      %p145 = por %p143, %p144
      %p146 = scmp.ne.s32.totalorder %s135, %s136
      %p147 = scmp.eq.s32.totalorder %s21, 0
      %p148 = por %p146, %p147
      %p149 = scmp.ne.s32.totalorder %s135, %s136
      %p150 = scmp.eq.s32.totalorder %s22, 7
      %p151 = por %p149, %p150
      %p153 = scmp.ne.s32.totalorder %s136, %s152
      %p154 = scmp.eq.s32.totalorder %s22, 0
      %p155 = por %p153, %p154
      %s156 = ssub.s32 %s24, %s31
      %p157 = scmp.eq.s32.totalorder %s156, 0
      %s159 = sadd.s32 %s158, 1
      %s160 = scalar_select %p157, %s158, %s159
      %p163 = pneg %p157
      %p164 = scmp.eq.s32.totalorder %s16, 7
      %p165 = por %p163, %p164
      %p166 = scmp.ne.s32.totalorder %s158, %s161
      %p167 = scmp.eq.s32.totalorder %s16, 0
      %p168 = por %p166, %p167
      %p169 = scmp.ne.s32.totalorder %s158, %s161
      %p170 = scmp.eq.s32.totalorder %s21, 7
      %p171 = por %p169, %p170
      %p172 = scmp.ne.s32.totalorder %s161, %s162
      %p173 = scmp.eq.s32.totalorder %s21, 0
      %p174 = por %p172, %p173
      %p175 = scmp.ne.s32.totalorder %s161, %s162
      %p176 = scmp.eq.s32.totalorder %s22, 7
      %p177 = por %p175, %p176
      %p179 = scmp.ne.s32.totalorder %s162, %s178
      %p180 = scmp.eq.s32.totalorder %s22, 0
      %p181 = por %p179, %p180
      %s183 = sadd.s32 %s182, 1
      %p186 = scmp.eq.s32.totalorder %s16, 7
      %p187 = scmp.ne.s32.totalorder %s182, %s184
      %p188 = scmp.eq.s32.totalorder %s16, 0
      %p189 = por %p187, %p188
      %p190 = scmp.ne.s32.totalorder %s182, %s184
      %p191 = scmp.eq.s32.totalorder %s21, 7
      %p192 = por %p190, %p191
      %p193 = scmp.ne.s32.totalorder %s184, %s185
      %p194 = scmp.eq.s32.totalorder %s21, 0
      %p195 = por %p193, %p194
      %p196 = scmp.ne.s32.totalorder %s184, %s185
      %p197 = scmp.eq.s32.totalorder %s22, 7
      %p198 = por %p196, %p197
      %p200 = scmp.ne.s32.totalorder %s185, %s199
      %p201 = scmp.eq.s32.totalorder %s22, 0
      %p202 = por %p200, %p201
      %s203 = ssub.s32 %s23, %s35
      %p204 = scmp.eq.s32.totalorder %s203, 0
      %s206 = sadd.s32 %s205, 1
      %s207 = scalar_select %p204, %s205, %s206
      %p210 = pneg %p204
      %p211 = scmp.eq.s32.totalorder %s16, 7
      %p212 = por %p210, %p211
      %p213 = scmp.ne.s32.totalorder %s205, %s208
      %p214 = scmp.eq.s32.totalorder %s16, 0
      %p215 = por %p213, %p214
      %p216 = scmp.ne.s32.totalorder %s205, %s208
      %p217 = scmp.eq.s32.totalorder %s21, 7
      %p218 = por %p216, %p217
      %p219 = scmp.ne.s32.totalorder %s208, %s209
      %p220 = scmp.eq.s32.totalorder %s21, 0
      %p221 = por %p219, %p220
      %p222 = scmp.ne.s32.totalorder %s208, %s209
      %p223 = scmp.eq.s32.totalorder %s22, 7
      %p224 = por %p222, %p223
      %p226 = scmp.ne.s32.totalorder %s209, %s225
      %p227 = scmp.eq.s32.totalorder %s22, 0
      %p228 = por %p226, %p227
      %p229 = scmp.le.s32.totalorder 1, %s16
      %p230 = scmp.lt.s32.totalorder %s16, 9
      %p231 = pnand %p229, %p230
      %p232 = pneg %p231
      // Predicated region
      $region9: #{causal_self_attention_after_ln.1} parent=5 // pred_check
        _
      $region10: #{causal_self_attention_after_ln.1} parent=5 // pred_check_branch
        %234 = sbr.rel (%p231) target = $region12
      $region11: #{causal_self_attention_after_ln.1} parent=5 // pred_region
        %s235 = ssub.s32 %s16, 1
        // Predicated region
        $region13: #{causal_self_attention_after_ln.1} parent=11 // pred_check
          %p236 = pneg %p75
        $region14: #{causal_self_attention_after_ln.1} parent=11 // pred_check_branch
          %238 = sbr.rel (%p236) target = $region16
        $region15: #{causal_self_attention_after_ln.1} parent=11 // pred_region
          _
        $region16: #{causal_self_attention_after_ln.1} parent=11 // pred_fallthru
          _
        // Predicated region
        $region17: #{causal_self_attention_after_ln.1} parent=11 // pred_check
          %p239 = pneg %p96
        $region18: #{causal_self_attention_after_ln.1} parent=11 // pred_check_branch
          %241 = sbr.rel (%p239) target = $region20
        $region19: #{causal_self_attention_after_ln.1} parent=11 // pred_region
          _
        $region20: #{causal_self_attention_after_ln.1} parent=11 // pred_fallthru
          _
        // Predicated region
        $region21: #{causal_self_attention_after_ln.1} parent=11 // pred_check
          %p242 = pneg %p195
        $region22: #{causal_self_attention_after_ln.1} parent=11 // pred_check_branch
          %244 = sbr.rel (%p242) target = $region24
        $region23: #{causal_self_attention_after_ln.1} parent=11 // pred_region
          _
        $region24: #{causal_self_attention_after_ln.1} parent=11 // pred_fallthru
          _
      $region12: #{causal_self_attention_after_ln.1} parent=5 // pred_fallthru
        _
      %p245 = scmp.lt.s32.totalorder %s16, 8
      // Predicated region
      $region25: #{causal_self_attention_after_ln.1} parent=5 // pred_check
        %p246 = pneg %p245
      $region26: #{causal_self_attention_after_ln.1} parent=5 // pred_check_branch
        %248 = sbr.rel (%p246) target = $region28
      $region27: #{causal_self_attention_after_ln.1} parent=5 // pred_region
        // Predicated region
        $region29: #{causal_self_attention_after_ln.1} parent=27 // pred_check
          %p249 = pneg %p48
        $region30: #{causal_self_attention_after_ln.1} parent=27 // pred_check_branch
          %251 = sbr.rel (%p249) target = $region32
        $region31: #{causal_self_attention_after_ln.1} parent=27 // pred_region
          %p252 = scmp.lt.s32.totalorder %s23, 1
          %s253 = scalar_select %p252, %s23, 1
          %s254 = smul.addr %s253, 8
          %s255 = scalar_lea.vmem %s0, %s254
        $region32: #{causal_self_attention_after_ln.1} parent=27 // pred_fallthru
          _
        // Predicated region
        $region33: #{causal_self_attention_after_ln.1} parent=27 // pred_check
          %p256 = pneg %p116
        $region34: #{causal_self_attention_after_ln.1} parent=27 // pred_check_branch
          %258 = sbr.rel (%p256) target = $region36
        $region35: #{causal_self_attention_after_ln.1} parent=27 // pred_region
          %p259 = scmp.lt.s32.totalorder %s24, 3
          %s260 = scalar_select %p259, %s24, 3
          %s261 = smul.addr %s260, 5
          %s262 = smul.addr %s261, 4
          %s263 = scalar_lea.vmem %s3, %s262
        $region36: #{causal_self_attention_after_ln.1} parent=27 // pred_fallthru
          _
        // Predicated region
        $region37: #{causal_self_attention_after_ln.1} parent=27 // pred_check
          %p264 = pneg %p142
        $region38: #{causal_self_attention_after_ln.1} parent=27 // pred_check_branch
          %266 = sbr.rel (%p264) target = $region40
        $region39: #{causal_self_attention_after_ln.1} parent=27 // pred_region
          %p267 = scmp.lt.s32.totalorder %s24, 3
          %s268 = scalar_select %p267, %s24, 3
          %s269 = scalar_lea.vmem %s4, %s268
        $region40: #{causal_self_attention_after_ln.1} parent=27 // pred_fallthru
          _
        // Predicated region
        $region41: #{causal_self_attention_after_ln.1} parent=27 // pred_check
          %p270 = pneg %p168
        $region42: #{causal_self_attention_after_ln.1} parent=27 // pred_check_branch
          %272 = sbr.rel (%p270) target = $region44
        $region43: #{causal_self_attention_after_ln.1} parent=27 // pred_region
          %p273 = scmp.lt.s32.totalorder %s24, 3
          %s274 = scalar_select %p273, %s24, 3
          %s275 = smul.addr %s274, 4
          %s276 = scalar_lea.vmem %s5, %s275
        $region44: #{causal_self_attention_after_ln.1} parent=27 // pred_fallthru
          _
      $region28: #{causal_self_attention_after_ln.1} parent=5 // pred_fallthru
        _
      %p277 = scmp.le.s32.totalorder 1, %s16
      %p278 = scmp.lt.s32.totalorder %s16, 9
      %p279 = pnand %p277, %p278
      %p280 = pneg %p279
      // Predicated region
      $region45: #{causal_self_attention_after_ln.1} parent=5 // pred_check
        _
      $region46: #{causal_self_attention_after_ln.1} parent=5 // pred_check_branch
        %282 = sbr.rel (%p279) target = $region48
      $region47: #{causal_self_attention_after_ln.1} parent=5 // pred_region
        %s283 = ssub.s32 %s16, 1
        %p284 = scmp.lt.s32.totalorder %s25, 1
        %s285 = scalar_select %p284, %s25, 1
        %s286 = smul.addr %s285, 8
        %s287 = scalar_lea.vmem %s0, %s286
        %p288 = pneg %p54
        %p289 = pneg %p51
        %p290 = pneg %p75
        %p291 = pneg %p72
        %p292 = pneg %p96
        %p293 = pneg %p93
        %p294 = scmp.lt.s32.totalorder %s26, 3
        %s295 = scalar_select %p294, %s26, 3
        %s296 = smul.addr %s295, 5
        %s297 = smul.addr %s296, 4
        %s298 = scalar_lea.vmem %s3, %s297
        %p299 = pneg %p122
        %p300 = pneg %p119
        %p301 = scmp.lt.s32.totalorder %s26, 3
        %s302 = scalar_select %p301, %s26, 3
        %s303 = scalar_lea.vmem %s4, %s302
        %p304 = pneg %p148
        %p305 = pneg %p145
        %p306 = scmp.lt.s32.totalorder %s26, 3
        %s307 = scalar_select %p306, %s26, 3
        %s308 = smul.addr %s307, 4
        %s309 = scalar_lea.vmem %s5, %s308
        %p310 = pneg %p174
        %p311 = pneg %p171
        %p312 = pneg %p195
        %p313 = pneg %p192
        %p314 = pneg %p221
        %p315 = pneg %p218
        %s316 = sand.u32 %s208, 1
        %s317 = scalar_lea.sflag [#allocation5], %s316
        %s318 = sand.u32 %s208, 1
        %s319 = smul.addr %s318, 8
        %s320 = scalar_lea.vmem [#allocation4], %s319
        %p321 = scmp.lt.s32.totalorder %s25, 1
        %s322 = scalar_select %p321, %s25, 1
        %s323 = smul.addr %s322, 8
        %s324 = scalar_lea.vmem %s0, %s323
        %p325 = scmp.lt.s32.totalorder %s26, 3
        %s326 = scalar_select %p325, %s26, 3
        %s327 = smul.addr %s326, 5
        %s328 = smul.addr %s327, 4
        %s329 = scalar_lea.vmem %s3, %s328
        %p330 = scmp.lt.s32.totalorder %s26, 3
        %s331 = scalar_select %p330, %s26, 3
        %s332 = scalar_lea.vmem %s4, %s331
        %p333 = scmp.lt.s32.totalorder %s26, 3
        %s334 = scalar_select %p333, %s26, 3
        %s335 = smul.addr %s334, 4
        %s336 = scalar_lea.vmem %s5, %s335
        %p339 = scmp.eq.s32.totalorder %s26, 0
        // Predicated region
        $region49: #{causal_self_attention_after_ln.1} parent=47 // pred_check
          %p340 = pneg %p339
        $region50: #{causal_self_attention_after_ln.1} parent=47 // pred_check_branch
          %342 = sbr.rel (%p340) target = $region52
        $region51: #{causal_self_attention_after_ln.1} parent=47 // pred_region
          %v343 = vld [vmem:[%s324] sm:$0xff]
          %vm344 = vcmask 269312
          %v345 = vsel %vm344, %v343, 0.0
          %346 = vadd.xlane.f32.xlu0 %v345
          %v347 = vpop.xlane.xlu0 %346
          %v348 = vrcp.pop 33.0
          %v349 = vmul.f32 %v347, %v348
          %v350 = vsub.f32 %v343, %v349
          %v351 = vmul.f32 %v350, %v350
          %v352 = vsel %vm344, %v351, 0.0
          %353 = vadd.xlane.f32.xlu0 %v352
          %v354 = vpop.xlane.xlu0 %353
          %v355 = vmul.f32 %v354, %v348
          %v356 = vadd.f32 %v355, 1e-05
          %v357 = vrsqrt.pop %v356
          %v358 = vmul.f32 %v350, %v357
          %v359 = vld [vmem:[%s1] sm:$0x1]
          %v361 = vlaneseq
          %v362 = vshrl.u32 %v361, 7
          %v363 = vsub.s32 0, %v362
          %v364 = vrot.slane %v359, %v363
          %v366 = vmul.f32 %v358, %v364
          %v367 = vld [vmem:[%s2] sm:$0x1]
          %v369 = vlaneseq
          %v370 = vshrl.u32 %v369, 7
          %v371 = vsub.s32 0, %v370
          %v372 = vrot.slane %v367, %v371
          %v374 = vadd.f32 %v366, %v372
          %v375 = vpack.c.bf16 %v374, %v374
          %vm376 = vcmask 265216
          %377 = vst.msk [vmem:[#allocation2] sm:$0xf] %vm376, %v375
          %vm378 = vcmask 261120
          %379 = vst.msk [vmem:[#allocation3] sm:$0xff] %vm378, 0.0
        $region52: #{causal_self_attention_after_ln.1} parent=47 // pred_fallthru
          _
        %v380 = vld [vmem:[#allocation2] sm:$0xf]
        %v381 = vld [vmem:[%s329] sm:$0xf]
        %v382 = vld [vmem:[%s329 + $0x4] sm:$0xf]
        %v383 = vld [vmem:[%s329 + $0x8] sm:$0xf]
        %v384 = vld [vmem:[%s329 + $0xc] sm:$0xf]
        %v385 = vld [vmem:[%s329 + $0x10] sm:$0x1]
        %v386 = vld [vmem:[%s332] sm:$0x1]
        %v388 = vlaneseq
        %v389 = vshrl.u32 %v388, 7
        %v390 = vsub.s32 0, %v389
        %v391 = vrot.slane %v386, %v390
        %v398 = vunpack.c.l.b16 %v381
        %v399 = vunpack.c.l.b16 %v382
        %v400 = vunpack.c.l.b16 %v383
        %v401 = vunpack.c.l.b16 %v384
        %v402 = vunpack.c.l.b16 %v385
        %v403 = vpack.c.b16 %v399, %v398
        %v404 = vpack.c.b16 %v401, %v400
        %v405 = vpack.c.b16 %v402, %v402
        %vm408 = vcmask 269312
        %v410 = vsel %vm408, %v380, 0
        %vm412 = vcmask 1040384
        %v413 = vsel 0, 4294967295, 65535
        %v414 = vsel %vm412, %v413, 0
        %v416 = vand.u32 %v405, %v414
        %418 = vmatprep.subr.bf16.mxu0 0
        %419 = vmatpush1.bf16.msra.mxu0 %v403
        %420 = vmatprep.subr.bf16.mxu0 0
        %421 = vmatpush1.bf16.msra.mxu0 %v404
        %422 = vmatprep.subr.bf16.mxu0 0
        %423 = vmatpush1.bf16.msra.mxu0 %v416
        %424 = vmatprep.subr.bf16.mxu0 0
        %425 = vmatpush1.bf16.msra.mxu0 0
        %426 = vmatprep.subr.bf16.mxu0 0
        %427 = vmatpush1.bf16.msra.mxu0 0
        %428 = vmatprep.subr.bf16.mxu0 0
        %429 = vmatpush1.bf16.msra.mxu0 0
        %430 = vmatprep.subr.bf16.mxu0 0
        %431 = vmatpush1.bf16.msra.mxu0 0
        %432 = vmatprep.subr.bf16.mxu0 0
        %433 = vmatpush1.bf16.msra.mxu0 0
        %434 = vmatprep.subr.bf16.mxu0 0
        %435 = vmatpush1.bf16.msra.mxu0 0
        %436 = vmatprep.subr.bf16.mxu0 0
        %437 = vmatpush1.bf16.msra.mxu0 0
        %438 = vmatprep.subr.bf16.mxu0 0
        %439 = vmatpush1.bf16.msra.mxu0 0
        %440 = vmatprep.subr.bf16.mxu0 0
        %441 = vmatpush1.bf16.msra.mxu0 0
        %442 = vmatprep.subr.bf16.mxu0 0
        %443 = vmatpush1.bf16.msra.mxu0 0
        %444 = vmatprep.subr.bf16.mxu0 0
        %445 = vmatpush1.bf16.msra.mxu0 0
        %446 = vmatprep.subr.bf16.mxu0 0
        %447 = vmatpush1.bf16.msra.mxu0 0
        %448 = vmatprep.subr.bf16.mxu0 0
        %449 = vmatpush1.bf16.msra.mxu0 0
        %450 = vmatprep.mubr.bf16.mxu0 0
        %451 = vmatmul.mubr.bf16.gmra.mrb[0].mxu0 %v410
        %v452 = vpop.f32.mrb[0].mxu0
        %v453 = vadd.f32 %v391, %v452
        %v454 = vpop.f32.mrb[0].mxu0
        %v455 = vpop.f32.mrb[0].mxu0
        %v456 = vpop.f32.mrb[0].mxu0
        %457 = vdwg.mxu0
        %v458 = vpack.c.bf16 %v453, %v453
        %v459 = vlaneseq
        %v460 = vshrl.u32 %v459, 7
        %v461 = vlaneseq
        %v462 = vand.u32 %v461, 127
        %464 = vrot.lane.b32.xlu0 %v458, 120
        %v465 = vpop.permute.xlu0 %464
        %vm466 = vcmask 64512
        %v468 = vsel %vm466, %v458, 0
        %v471 = vsel %vm466, %v465, 0
        %473 = vmatprep.subr.bf16.mxu0 0
        %474 = vmatpush1.bf16.xpose.msra.mxu0 %v471
        %475 = vmatprep.subr.bf16.mxu0 0
        %476 = vmatpush1.bf16.xpose.msra.mxu0 0
        %477 = vmatprep.subr.bf16.mxu0 0
        %478 = vmatpush1.bf16.xpose.msra.mxu0 0
        %479 = vmatprep.subr.bf16.mxu0 0
        %480 = vmatpush1.bf16.xpose.msra.mxu0 0
        %481 = vmatprep.subr.bf16.mxu0 0
        %482 = vmatpush1.bf16.xpose.msra.mxu0 0
        %483 = vmatprep.subr.bf16.mxu0 0
        %484 = vmatpush1.bf16.xpose.msra.mxu0 0
        %485 = vmatprep.subr.bf16.mxu0 0
        %486 = vmatpush1.bf16.xpose.msra.mxu0 0
        %487 = vmatprep.subr.bf16.mxu0 0
        %488 = vmatpush1.bf16.xpose.msra.mxu0 0
        %489 = vmatprep.subr.bf16.mxu0 0
        %490 = vmatpush1.bf16.xpose.msra.mxu0 0
        %491 = vmatprep.subr.bf16.mxu0 0
        %492 = vmatpush1.bf16.xpose.msra.mxu0 0
        %493 = vmatprep.subr.bf16.mxu0 0
        %494 = vmatpush1.bf16.xpose.msra.mxu0 0
        %495 = vmatprep.subr.bf16.mxu0 0
        %496 = vmatpush1.bf16.xpose.msra.mxu0 0
        %497 = vmatprep.subr.bf16.mxu0 0
        %498 = vmatpush1.bf16.xpose.msra.mxu0 0
        %499 = vmatprep.subr.bf16.mxu0 0
        %500 = vmatpush1.bf16.xpose.msra.mxu0 0
        %501 = vmatprep.subr.bf16.mxu0 0
        %502 = vmatpush1.bf16.xpose.msra.mxu0 0
        %503 = vmatprep.subr.bf16.mxu0 0
        %504 = vmatpush1.bf16.xpose.msra.mxu0 0
        %505 = vmatprep.mubr.bf16.mxu0 0
        %506 = vmatmul.mubr.bf16.gmra.mrb[0].mxu0 %v468
        %v507 = vpop.f32.mrb[0].mxu0
        %v508 = vadd.f32 0.0, %v507
        %v509 = vpop.f32.mrb[0].mxu0
        %v510 = vpop.f32.mrb[0].mxu0
        %v511 = vpop.f32.mrb[0].mxu0
        %512 = vdwg.mxu0
        %vm513 = vcmp.le.s32.totalorder %v462, %v460
        %v514 = vsel %vm513, %v508, -1e+30
        %v515 = vsel %vm466, %v514, -inf
        %516 = vmax.xlane.f32.xlu0 %v515
        %v517 = vpop.xlane.xlu0 %516
        %v518 = vsub.f32 %v514, %v517
        %v519 = vpack.c.bf16 %v518, %v518
        %v521 = vmul.bf16 %v519, 1069105081
        %v522 = vpow.bf16.pop %v521
        %v523 = vunpack.c.l.bf16 %v522
        %v524 = vsel %vm466, %v523, 0.0
        %525 = vadd.xlane.f32.xlu0 %v524
        %v526 = vpop.xlane.xlu0 %525
        %v527 = vrcp.pop %v526
        %v528 = vmul.f32 1.0, %v527
        %v529 = vpack.c.bf16 %v528, %v528
        %v530 = vmul.bf16 %v522, %v529
        %v532 = vmul.bf16 %v530, 1069105081
        %v533 = vpow.bf16.pop %v532
        %v535 = vsel %vm466, %v533, 0
        %vm537 = vcmask 1043456
        %v539 = vsel %vm537, 1065369472, 0
        %541 = vmatprep.subr.bf16.mxu0 0
        %542 = vmatpush1.bf16.msra.mxu0 %v539
        %543 = vmatprep.subr.bf16.mxu0 0
        %544 = vmatpush1.bf16.msra.mxu0 0
        %545 = vmatprep.subr.bf16.mxu0 0
        %546 = vmatpush1.bf16.msra.mxu0 0
        %547 = vmatprep.subr.bf16.mxu0 0
        %548 = vmatpush1.bf16.msra.mxu0 0
        %549 = vmatprep.subr.bf16.mxu0 0
        %550 = vmatpush1.bf16.msra.mxu0 0
        %551 = vmatprep.subr.bf16.mxu0 0
        %552 = vmatpush1.bf16.msra.mxu0 0
        %553 = vmatprep.subr.bf16.mxu0 0
        %554 = vmatpush1.bf16.msra.mxu0 0
        %555 = vmatprep.subr.bf16.mxu0 0
        %556 = vmatpush1.bf16.msra.mxu0 0
        %557 = vmatprep.subr.bf16.mxu0 0
        %558 = vmatpush1.bf16.msra.mxu0 0
        %559 = vmatprep.subr.bf16.mxu0 0
        %560 = vmatpush1.bf16.msra.mxu0 0
        %561 = vmatprep.subr.bf16.mxu0 0
        %562 = vmatpush1.bf16.msra.mxu0 0
        %563 = vmatprep.subr.bf16.mxu0 0
        %564 = vmatpush1.bf16.msra.mxu0 0
        %565 = vmatprep.subr.bf16.mxu0 0
        %566 = vmatpush1.bf16.msra.mxu0 0
        %567 = vmatprep.subr.bf16.mxu0 0
        %568 = vmatpush1.bf16.msra.mxu0 0
        %569 = vmatprep.subr.bf16.mxu0 0
        %570 = vmatpush1.bf16.msra.mxu0 0
        %571 = vmatprep.subr.bf16.mxu0 0
        %572 = vmatpush1.bf16.msra.mxu0 0
        %573 = vmatprep.mubr.bf16.mxu0 0
        %574 = vmatmul.mubr.bf16.gmra.mrb[0].mxu0 %v535
        %v575 = vpop.f32.mrb[0].mxu0
        %v576 = vadd.f32 0.0, %v575
        %v577 = vpop.f32.mrb[0].mxu0
        %v578 = vpop.f32.mrb[0].mxu0
        %v579 = vpop.f32.mrb[0].mxu0
        %580 = vdwg.mxu0
        %v581 = vrcp.pop %v576
        %v582 = vmul.f32 0.12500001, %v581
        %v583 = vpack.c.bf16 %v582, %v582
        %584 = vxpose.xlu0.c.b16.start [1/8] %v533, 128
        %585 = vxpose.xlu0.c.b16.cont [2/8] 0, 128
        %586 = vxpose.xlu0.c.b16.cont [3/8] 0, 128
        %587 = vxpose.xlu0.c.b16.cont [4/8] 0, 128
        %588 = vxpose.xlu0.c.b16.cont [5/8] 0, 128
        %589 = vxpose.xlu0.c.b16.cont [6/8] 0, 128
        %590 = vxpose.xlu0.c.b16.cont [7/8] 0, 128
        %591 = vxpose.xlu0.c.b16.end [8/8] 0, 128
        %v592 = vpop.trf.xlu0
        %v593 = vpop.trf.xlu0
        %v594 = vpop.trf.xlu0
        %v595 = vpop.trf.xlu0
        %v596 = vpop.trf.xlu0
        %v597 = vpop.trf.xlu0
        %v598 = vpop.trf.xlu0
        %v599 = vpop.trf.xlu0
        %v601 = vsel %vm466, %v592, 0
        %v604 = vsel %vm537, %v583, 0
        %606 = vmatprep.subr.bf16.mxu0 0
        %607 = vmatpush1.bf16.msra.mxu0 %v604
        %608 = vmatprep.subr.bf16.mxu0 0
        %609 = vmatpush1.bf16.msra.mxu0 0
        %610 = vmatprep.subr.bf16.mxu0 0
        %611 = vmatpush1.bf16.msra.mxu0 0
        %612 = vmatprep.subr.bf16.mxu0 0
        %613 = vmatpush1.bf16.msra.mxu0 0
        %614 = vmatprep.subr.bf16.mxu0 0
        %615 = vmatpush1.bf16.msra.mxu0 0
        %616 = vmatprep.subr.bf16.mxu0 0
        %617 = vmatpush1.bf16.msra.mxu0 0
        %618 = vmatprep.subr.bf16.mxu0 0
        %619 = vmatpush1.bf16.msra.mxu0 0
        %620 = vmatprep.subr.bf16.mxu0 0
        %621 = vmatpush1.bf16.msra.mxu0 0
        %622 = vmatprep.subr.bf16.mxu0 0
        %623 = vmatpush1.bf16.msra.mxu0 0
        %624 = vmatprep.subr.bf16.mxu0 0
        %625 = vmatpush1.bf16.msra.mxu0 0
        %626 = vmatprep.subr.bf16.mxu0 0
        %627 = vmatpush1.bf16.msra.mxu0 0
        %628 = vmatprep.subr.bf16.mxu0 0
        %629 = vmatpush1.bf16.msra.mxu0 0
        %630 = vmatprep.subr.bf16.mxu0 0
        %631 = vmatpush1.bf16.msra.mxu0 0
        %632 = vmatprep.subr.bf16.mxu0 0
        %633 = vmatpush1.bf16.msra.mxu0 0
        %634 = vmatprep.subr.bf16.mxu0 0
        %635 = vmatpush1.bf16.msra.mxu0 0
        %636 = vmatprep.subr.bf16.mxu0 0
        %637 = vmatpush1.bf16.msra.mxu0 0
        %638 = vmatprep.mubr.bf16.mxu0 0
        %639 = vmatmul.mubr.bf16.gmra.mrb[0].mxu0 %v601
        %v640 = vpop.f32.mrb[0].mxu0
        %v641 = vadd.f32 0.0, %v640
        %v642 = vpop.f32.mrb[0].mxu0
        %v643 = vpop.f32.mrb[0].mxu0
        %v644 = vpop.f32.mrb[0].mxu0
        %645 = vdwg.mxu0
        %v646 = vrcp.pop %v641
        %v647 = vmul.f32 0.12500001, %v646
        %v648 = vpack.c.bf16 %v647, %v647
        %v650 = vsel %vm537, %v648, 0
        %652 = vmatprep.subr.bf16.mxu0 0
        %653 = vmatpush1.bf16.msra.mxu0 %v650
        %654 = vmatprep.subr.bf16.mxu0 0
        %655 = vmatpush1.bf16.msra.mxu0 0
        %656 = vmatprep.subr.bf16.mxu0 0
        %657 = vmatpush1.bf16.msra.mxu0 0
        %658 = vmatprep.subr.bf16.mxu0 0
        %659 = vmatpush1.bf16.msra.mxu0 0
        %660 = vmatprep.subr.bf16.mxu0 0
        %661 = vmatpush1.bf16.msra.mxu0 0
        %662 = vmatprep.subr.bf16.mxu0 0
        %663 = vmatpush1.bf16.msra.mxu0 0
        %664 = vmatprep.subr.bf16.mxu0 0
        %665 = vmatpush1.bf16.msra.mxu0 0
        %666 = vmatprep.subr.bf16.mxu0 0
        %667 = vmatpush1.bf16.msra.mxu0 0
        %668 = vmatprep.subr.bf16.mxu0 0
        %669 = vmatpush1.bf16.msra.mxu0 0
        %670 = vmatprep.subr.bf16.mxu0 0
        %671 = vmatpush1.bf16.msra.mxu0 0
        %672 = vmatprep.subr.bf16.mxu0 0
        %673 = vmatpush1.bf16.msra.mxu0 0
        %674 = vmatprep.subr.bf16.mxu0 0
        %675 = vmatpush1.bf16.msra.mxu0 0
        %676 = vmatprep.subr.bf16.mxu0 0
        %677 = vmatpush1.bf16.msra.mxu0 0
        %678 = vmatprep.subr.bf16.mxu0 0
        %679 = vmatpush1.bf16.msra.mxu0 0
        %680 = vmatprep.subr.bf16.mxu0 0
        %681 = vmatpush1.bf16.msra.mxu0 0
        %682 = vmatprep.subr.bf16.mxu0 0
        %683 = vmatpush1.bf16.msra.mxu0 0
        %684 = vmatprep.mubr.bf16.mxu0 0
        %685 = vmatmul.mubr.bf16.gmra.mrb[0].mxu0 %v535
        %v686 = vpop.f32.mrb[0].mxu0
        %v687 = vadd.f32 0.0, %v686
        %v688 = vpop.f32.mrb[0].mxu0
        %v689 = vpop.f32.mrb[0].mxu0
        %v690 = vpop.f32.mrb[0].mxu0
        %691 = vdwg.mxu0
        %v692 = vrcp.pop %v687
        %v693 = vmul.f32 0.12500001, %v692
        %v694 = vpack.c.bf16 %v693, %v693
        %v696 = vsel %vm537, %v694, 0
        %698 = vmatprep.subr.bf16.mxu0 0
        %699 = vmatpush1.bf16.msra.mxu0 %v696
        %700 = vmatprep.subr.bf16.mxu0 0
        %701 = vmatpush1.bf16.msra.mxu0 0
        %702 = vmatprep.subr.bf16.mxu0 0
        %703 = vmatpush1.bf16.msra.mxu0 0
        %704 = vmatprep.subr.bf16.mxu0 0
        %705 = vmatpush1.bf16.msra.mxu0 0
        %706 = vmatprep.subr.bf16.mxu0 0
        %707 = vmatpush1.bf16.msra.mxu0 0
        %708 = vmatprep.subr.bf16.mxu0 0
        %709 = vmatpush1.bf16.msra.mxu0 0
        %710 = vmatprep.subr.bf16.mxu0 0
        %711 = vmatpush1.bf16.msra.mxu0 0
        %712 = vmatprep.subr.bf16.mxu0 0
        %713 = vmatpush1.bf16.msra.mxu0 0
        %714 = vmatprep.subr.bf16.mxu0 0
        %715 = vmatpush1.bf16.msra.mxu0 0
        %716 = vmatprep.subr.bf16.mxu0 0
        %717 = vmatpush1.bf16.msra.mxu0 0
        %718 = vmatprep.subr.bf16.mxu0 0
        %719 = vmatpush1.bf16.msra.mxu0 0
        %720 = vmatprep.subr.bf16.mxu0 0
        %721 = vmatpush1.bf16.msra.mxu0 0
        %722 = vmatprep.subr.bf16.mxu0 0
        %723 = vmatpush1.bf16.msra.mxu0 0
        %724 = vmatprep.subr.bf16.mxu0 0
        %725 = vmatpush1.bf16.msra.mxu0 0
        %726 = vmatprep.subr.bf16.mxu0 0
        %727 = vmatpush1.bf16.msra.mxu0 0
        %728 = vmatprep.subr.bf16.mxu0 0
        %729 = vmatpush1.bf16.msra.mxu0 0
        %730 = vmatprep.mubr.bf16.mxu0 0
        %731 = vmatmul.mubr.bf16.gmra.mrb[0].mxu0 %v601
        %v732 = vpop.f32.mrb[0].mxu0
        %v733 = vadd.f32 0.0, %v732
        %v734 = vpop.f32.mrb[0].mxu0
        %v735 = vpop.f32.mrb[0].mxu0
        %v736 = vpop.f32.mrb[0].mxu0
        %737 = vdwg.mxu0
        %v738 = vrcp.pop %v733
        %v739 = vmul.f32 0.12500001, %v738
        %v740 = vpack.c.bf16 %v739, %v739
        %v742 = vsel %vm537, %v740, 0
        %744 = vmatprep.subr.bf16.mxu0 0
        %745 = vmatpush1.bf16.msra.mxu0 %v742
        %746 = vmatprep.subr.bf16.mxu0 0
        %747 = vmatpush1.bf16.msra.mxu0 0
        %748 = vmatprep.subr.bf16.mxu0 0
        %749 = vmatpush1.bf16.msra.mxu0 0
        %750 = vmatprep.subr.bf16.mxu0 0
        %751 = vmatpush1.bf16.msra.mxu0 0
        %752 = vmatprep.subr.bf16.mxu0 0
        %753 = vmatpush1.bf16.msra.mxu0 0
        %754 = vmatprep.subr.bf16.mxu0 0
        %755 = vmatpush1.bf16.msra.mxu0 0
        %756 = vmatprep.subr.bf16.mxu0 0
        %757 = vmatpush1.bf16.msra.mxu0 0
        %758 = vmatprep.subr.bf16.mxu0 0
        %759 = vmatpush1.bf16.msra.mxu0 0
        %760 = vmatprep.subr.bf16.mxu0 0
        %761 = vmatpush1.bf16.msra.mxu0 0
        %762 = vmatprep.subr.bf16.mxu0 0
        %763 = vmatpush1.bf16.msra.mxu0 0
        %764 = vmatprep.subr.bf16.mxu0 0
        %765 = vmatpush1.bf16.msra.mxu0 0
        %766 = vmatprep.subr.bf16.mxu0 0
        %767 = vmatpush1.bf16.msra.mxu0 0
        %768 = vmatprep.subr.bf16.mxu0 0
        %769 = vmatpush1.bf16.msra.mxu0 0
        %770 = vmatprep.subr.bf16.mxu0 0
        %771 = vmatpush1.bf16.msra.mxu0 0
        %772 = vmatprep.subr.bf16.mxu0 0
        %773 = vmatpush1.bf16.msra.mxu0 0
        %774 = vmatprep.subr.bf16.mxu0 0
        %775 = vmatpush1.bf16.msra.mxu0 0
        %776 = vmatprep.mubr.bf16.mxu0 0
        %777 = vmatmul.mubr.bf16.gmra.mrb[0].mxu0 %v535
        %v778 = vpop.f32.mrb[0].mxu0
        %v779 = vadd.f32 0.0, %v778
        %v780 = vpop.f32.mrb[0].mxu0
        %v781 = vpop.f32.mrb[0].mxu0
        %v782 = vpop.f32.mrb[0].mxu0
        %783 = vdwg.mxu0
        %v784 = vrcp.pop %v779
        %v785 = vmul.f32 0.12500001, %v784
        %v786 = vpack.c.bf16 %v785, %v785
        %v788 = vsel %vm537, %v786, 0
        %790 = vmatprep.subr.bf16.mxu0 0
        %791 = vmatpush1.bf16.msra.mxu0 %v788
        %792 = vmatprep.subr.bf16.mxu0 0
        %793 = vmatpush1.bf16.msra.mxu0 0
        %794 = vmatprep.subr.bf16.mxu0 0
        %795 = vmatpush1.bf16.msra.mxu0 0
        %796 = vmatprep.subr.bf16.mxu0 0
        %797 = vmatpush1.bf16.msra.mxu0 0
        %798 = vmatprep.subr.bf16.mxu0 0
        %799 = vmatpush1.bf16.msra.mxu0 0
        %800 = vmatprep.subr.bf16.mxu0 0
        %801 = vmatpush1.bf16.msra.mxu0 0
        %802 = vmatprep.subr.bf16.mxu0 0
        %803 = vmatpush1.bf16.msra.mxu0 0
        %804 = vmatprep.subr.bf16.mxu0 0
        %805 = vmatpush1.bf16.msra.mxu0 0
        %806 = vmatprep.subr.bf16.mxu0 0
        %807 = vmatpush1.bf16.msra.mxu0 0
        %808 = vmatprep.subr.bf16.mxu0 0
        %809 = vmatpush1.bf16.msra.mxu0 0
        %810 = vmatprep.subr.bf16.mxu0 0
        %811 = vmatpush1.bf16.msra.mxu0 0
        %812 = vmatprep.subr.bf16.mxu0 0
        %813 = vmatpush1.bf16.msra.mxu0 0
        %814 = vmatprep.subr.bf16.mxu0 0
        %815 = vmatpush1.bf16.msra.mxu0 0
        %816 = vmatprep.subr.bf16.mxu0 0
        %817 = vmatpush1.bf16.msra.mxu0 0
        %818 = vmatprep.subr.bf16.mxu0 0
        %819 = vmatpush1.bf16.msra.mxu0 0
        %820 = vmatprep.subr.bf16.mxu0 0
        %821 = vmatpush1.bf16.msra.mxu0 0
        %822 = vmatprep.mubr.bf16.mxu0 0
        %823 = vmatmul.mubr.bf16.gmra.mrb[0].mxu0 %v601
        %v824 = vpop.f32.mrb[0].mxu0
        %v825 = vadd.f32 0.0, %v824
        %v826 = vpop.f32.mrb[0].mxu0
        %v827 = vpop.f32.mrb[0].mxu0
        %v828 = vpop.f32.mrb[0].mxu0
        %829 = vdwg.mxu0
        %v830 = vrcp.pop %v825
        %v831 = vmul.f32 0.12500001, %v830
        %v832 = vpack.c.bf16 %v831, %v831
        %v834 = vsel %vm537, %v832, 0
        %836 = vmatprep.subr.bf16.mxu0 0
        %837 = vmatpush1.bf16.msra.mxu0 %v834
        %838 = vmatprep.subr.bf16.mxu0 0
        %839 = vmatpush1.bf16.msra.mxu0 0
        %840 = vmatprep.subr.bf16.mxu0 0
        %841 = vmatpush1.bf16.msra.mxu0 0
        %842 = vmatprep.subr.bf16.mxu0 0
        %843 = vmatpush1.bf16.msra.mxu0 0
        %844 = vmatprep.subr.bf16.mxu0 0
        %845 = vmatpush1.bf16.msra.mxu0 0
        %846 = vmatprep.subr.bf16.mxu0 0
        %847 = vmatpush1.bf16.msra.mxu0 0
        %848 = vmatprep.subr.bf16.mxu0 0
        %849 = vmatpush1.bf16.msra.mxu0 0
        %850 = vmatprep.subr.bf16.mxu0 0
        %851 = vmatpush1.bf16.msra.mxu0 0
        %852 = vmatprep.subr.bf16.mxu0 0
        %853 = vmatpush1.bf16.msra.mxu0 0
        %854 = vmatprep.subr.bf16.mxu0 0
        %855 = vmatpush1.bf16.msra.mxu0 0
        %856 = vmatprep.subr.bf16.mxu0 0
        %857 = vmatpush1.bf16.msra.mxu0 0
        %858 = vmatprep.subr.bf16.mxu0 0
        %859 = vmatpush1.bf16.msra.mxu0 0
        %860 = vmatprep.subr.bf16.mxu0 0
        %861 = vmatpush1.bf16.msra.mxu0 0
        %862 = vmatprep.subr.bf16.mxu0 0
        %863 = vmatpush1.bf16.msra.mxu0 0
        %864 = vmatprep.subr.bf16.mxu0 0
        %865 = vmatpush1.bf16.msra.mxu0 0
        %866 = vmatprep.subr.bf16.mxu0 0
        %867 = vmatpush1.bf16.msra.mxu0 0
        %868 = vmatprep.mubr.bf16.mxu0 0
        %869 = vmatmul.mubr.bf16.gmra.mrb[0].mxu0 %v535
        %v870 = vpop.f32.mrb[0].mxu0
        %v871 = vadd.f32 0.0, %v870
        %v872 = vpop.f32.mrb[0].mxu0
        %v873 = vpop.f32.mrb[0].mxu0
        %v874 = vpop.f32.mrb[0].mxu0
        %875 = vdwg.mxu0
        %v876 = vrcp.pop %v871
        %v877 = vmul.f32 0.12500001, %v876
        %v878 = vpack.c.bf16 %v877, %v877
        %v880 = vsel %vm537, %v878, 0
        %882 = vmatprep.subr.bf16.mxu0 0
        %883 = vmatpush1.bf16.msra.mxu0 %v880
        %884 = vmatprep.subr.bf16.mxu0 0
        %885 = vmatpush1.bf16.msra.mxu0 0
        %886 = vmatprep.subr.bf16.mxu0 0
        %887 = vmatpush1.bf16.msra.mxu0 0
        %888 = vmatprep.subr.bf16.mxu0 0
        %889 = vmatpush1.bf16.msra.mxu0 0
        %890 = vmatprep.subr.bf16.mxu0 0
        %891 = vmatpush1.bf16.msra.mxu0 0
        %892 = vmatprep.subr.bf16.mxu0 0
        %893 = vmatpush1.bf16.msra.mxu0 0
        %894 = vmatprep.subr.bf16.mxu0 0
        %895 = vmatpush1.bf16.msra.mxu0 0
        %896 = vmatprep.subr.bf16.mxu0 0
        %897 = vmatpush1.bf16.msra.mxu0 0
        %898 = vmatprep.subr.bf16.mxu0 0
        %899 = vmatpush1.bf16.msra.mxu0 0
        %900 = vmatprep.subr.bf16.mxu0 0
        %901 = vmatpush1.bf16.msra.mxu0 0
        %902 = vmatprep.subr.bf16.mxu0 0
        %903 = vmatpush1.bf16.msra.mxu0 0
        %904 = vmatprep.subr.bf16.mxu0 0
        %905 = vmatpush1.bf16.msra.mxu0 0
        %906 = vmatprep.subr.bf16.mxu0 0
        %907 = vmatpush1.bf16.msra.mxu0 0
        %908 = vmatprep.subr.bf16.mxu0 0
        %909 = vmatpush1.bf16.msra.mxu0 0
        %910 = vmatprep.subr.bf16.mxu0 0
        %911 = vmatpush1.bf16.msra.mxu0 0
        %912 = vmatprep.subr.bf16.mxu0 0
        %913 = vmatpush1.bf16.msra.mxu0 0
        %914 = vmatprep.mubr.bf16.mxu0 0
        %915 = vmatmul.mubr.bf16.gmra.mrb[0].mxu0 %v601
        %v916 = vpop.f32.mrb[0].mxu0
        %v917 = vadd.f32 0.0, %v916
        %v918 = vpop.f32.mrb[0].mxu0
        %v919 = vpop.f32.mrb[0].mxu0
        %v920 = vpop.f32.mrb[0].mxu0
        %921 = vdwg.mxu0
        %v922 = vrcp.pop %v917
        %v923 = vmul.f32 0.12500001, %v922
        %v924 = vpack.c.bf16 %v923, %v923
        %v926 = vsel %vm537, %v924, 0
        %928 = vmatprep.subr.bf16.mxu0 0
        %929 = vmatpush1.bf16.msra.mxu0 %v926
        %930 = vmatprep.subr.bf16.mxu0 0
        %931 = vmatpush1.bf16.msra.mxu0 0
        %932 = vmatprep.subr.bf16.mxu0 0
        %933 = vmatpush1.bf16.msra.mxu0 0
        %934 = vmatprep.subr.bf16.mxu0 0
        %935 = vmatpush1.bf16.msra.mxu0 0
        %936 = vmatprep.subr.bf16.mxu0 0
        %937 = vmatpush1.bf16.msra.mxu0 0
        %938 = vmatprep.subr.bf16.mxu0 0
        %939 = vmatpush1.bf16.msra.mxu0 0
        %940 = vmatprep.subr.bf16.mxu0 0
        %941 = vmatpush1.bf16.msra.mxu0 0
        %942 = vmatprep.subr.bf16.mxu0 0
        %943 = vmatpush1.bf16.msra.mxu0 0
        %944 = vmatprep.subr.bf16.mxu0 0
        %945 = vmatpush1.bf16.msra.mxu0 0
        %946 = vmatprep.subr.bf16.mxu0 0
        %947 = vmatpush1.bf16.msra.mxu0 0
        %948 = vmatprep.subr.bf16.mxu0 0
        %949 = vmatpush1.bf16.msra.mxu0 0
        %950 = vmatprep.subr.bf16.mxu0 0
        %951 = vmatpush1.bf16.msra.mxu0 0
        %952 = vmatprep.subr.bf16.mxu0 0
        %953 = vmatpush1.bf16.msra.mxu0 0
        %954 = vmatprep.subr.bf16.mxu0 0
        %955 = vmatpush1.bf16.msra.mxu0 0
        %956 = vmatprep.subr.bf16.mxu0 0
        %957 = vmatpush1.bf16.msra.mxu0 0
        %958 = vmatprep.subr.bf16.mxu0 0
        %959 = vmatpush1.bf16.msra.mxu0 0
        %960 = vmatprep.mubr.bf16.mxu0 0
        %961 = vmatmul.mubr.bf16.gmra.mrb[0].mxu0 %v535
        %v962 = vpop.f32.mrb[0].mxu0
        %v963 = vadd.f32 0.0, %v962
        %v964 = vpop.f32.mrb[0].mxu0
        %v965 = vpop.f32.mrb[0].mxu0
        %v966 = vpop.f32.mrb[0].mxu0
        %967 = vdwg.mxu0
        %v968 = vrcp.pop %v963
        %v969 = vmul.f32 0.12500001, %v968
        %v970 = vpack.c.bf16 %v969, %v969
        %v972 = vsel %vm537, %v970, 0
        %974 = vmatprep.subr.bf16.mxu0 0
        %975 = vmatpush1.bf16.msra.mxu0 %v972
        %976 = vmatprep.subr.bf16.mxu0 0
        %977 = vmatpush1.bf16.msra.mxu0 0
        %978 = vmatprep.subr.bf16.mxu0 0
        %979 = vmatpush1.bf16.msra.mxu0 0
        %980 = vmatprep.subr.bf16.mxu0 0
        %981 = vmatpush1.bf16.msra.mxu0 0
        %982 = vmatprep.subr.bf16.mxu0 0
        %983 = vmatpush1.bf16.msra.mxu0 0
        %984 = vmatprep.subr.bf16.mxu0 0
        %985 = vmatpush1.bf16.msra.mxu0 0
        %986 = vmatprep.subr.bf16.mxu0 0
        %987 = vmatpush1.bf16.msra.mxu0 0
        %988 = vmatprep.subr.bf16.mxu0 0
        %989 = vmatpush1.bf16.msra.mxu0 0
        %990 = vmatprep.subr.bf16.mxu0 0
        %991 = vmatpush1.bf16.msra.mxu0 0
        %992 = vmatprep.subr.bf16.mxu0 0
        %993 = vmatpush1.bf16.msra.mxu0 0
        %994 = vmatprep.subr.bf16.mxu0 0
        %995 = vmatpush1.bf16.msra.mxu0 0
        %996 = vmatprep.subr.bf16.mxu0 0
        %997 = vmatpush1.bf16.msra.mxu0 0
        %998 = vmatprep.subr.bf16.mxu0 0
        %999 = vmatpush1.bf16.msra.mxu0 0
        %1000 = vmatprep.subr.bf16.mxu0 0
        %1001 = vmatpush1.bf16.msra.mxu0 0
        %1002 = vmatprep.subr.bf16.mxu0 0
        %1003 = vmatpush1.bf16.msra.mxu0 0
        %1004 = vmatprep.subr.bf16.mxu0 0
        %1005 = vmatpush1.bf16.msra.mxu0 0
        %1006 = vmatprep.mubr.bf16.mxu0 0
        %1007 = vmatmul.mubr.bf16.gmra.mrb[0].mxu0 %v601
        %v1008 = vpop.f32.mrb[0].mxu0
        %v1009 = vadd.f32 0.0, %v1008
        %v1010 = vpop.f32.mrb[0].mxu0
        %v1011 = vpop.f32.mrb[0].mxu0
        %v1012 = vpop.f32.mrb[0].mxu0
        %1013 = vdwg.mxu0
        %v1014 = vrcp.pop %v1009
        %v1015 = vmul.f32 0.12500001, %v1014
        %v1016 = vpack.c.bf16 %v1015, %v1015
        %v1018 = vsel %vm537, %v1016, 0
        %1020 = vmatprep.subr.bf16.mxu0 0
        %1021 = vmatpush1.bf16.msra.mxu0 %v1018
        %1022 = vmatprep.subr.bf16.mxu0 0
        %1023 = vmatpush1.bf16.msra.mxu0 0
        %1024 = vmatprep.subr.bf16.mxu0 0
        %1025 = vmatpush1.bf16.msra.mxu0 0
        %1026 = vmatprep.subr.bf16.mxu0 0
        %1027 = vmatpush1.bf16.msra.mxu0 0
        %1028 = vmatprep.subr.bf16.mxu0 0
        %1029 = vmatpush1.bf16.msra.mxu0 0
        %1030 = vmatprep.subr.bf16.mxu0 0
        %1031 = vmatpush1.bf16.msra.mxu0 0
        %1032 = vmatprep.subr.bf16.mxu0 0
        %1033 = vmatpush1.bf16.msra.mxu0 0
        %1034 = vmatprep.subr.bf16.mxu0 0
        %1035 = vmatpush1.bf16.msra.mxu0 0
        %1036 = vmatprep.subr.bf16.mxu0 0
        %1037 = vmatpush1.bf16.msra.mxu0 0
        %1038 = vmatprep.subr.bf16.mxu0 0
        %1039 = vmatpush1.bf16.msra.mxu0 0
        %1040 = vmatprep.subr.bf16.mxu0 0
        %1041 = vmatpush1.bf16.msra.mxu0 0
        %1042 = vmatprep.subr.bf16.mxu0 0
        %1043 = vmatpush1.bf16.msra.mxu0 0
        %1044 = vmatprep.subr.bf16.mxu0 0
        %1045 = vmatpush1.bf16.msra.mxu0 0
        %1046 = vmatprep.subr.bf16.mxu0 0
        %1047 = vmatpush1.bf16.msra.mxu0 0
        %1048 = vmatprep.subr.bf16.mxu0 0
        %1049 = vmatpush1.bf16.msra.mxu0 0
        %1050 = vmatprep.subr.bf16.mxu0 0
        %1051 = vmatpush1.bf16.msra.mxu0 0
        %1052 = vmatprep.mubr.bf16.mxu0 0
        %1053 = vmatmul.mubr.bf16.gmra.mrb[0].mxu0 %v535
        %v1054 = vpop.f32.mrb[0].mxu0
        %v1055 = vadd.f32 0.0, %v1054
        %v1056 = vpop.f32.mrb[0].mxu0
        %v1057 = vpop.f32.mrb[0].mxu0
        %v1058 = vpop.f32.mrb[0].mxu0
        %1059 = vdwg.mxu0
        %v1060 = vrcp.pop %v1055
        %v1061 = vmul.f32 0.12500001, %v1060
        %v1062 = vpack.c.bf16 %v1061, %v1061
        %v1064 = vsel %vm537, %v1062, 0
        %1066 = vmatprep.subr.bf16.mxu0 0
        %1067 = vmatpush1.bf16.msra.mxu0 %v1064
        %1068 = vmatprep.subr.bf16.mxu0 0
        %1069 = vmatpush1.bf16.msra.mxu0 0
        %1070 = vmatprep.subr.bf16.mxu0 0
        %1071 = vmatpush1.bf16.msra.mxu0 0
        %1072 = vmatprep.subr.bf16.mxu0 0
        %1073 = vmatpush1.bf16.msra.mxu0 0
        %1074 = vmatprep.subr.bf16.mxu0 0
        %1075 = vmatpush1.bf16.msra.mxu0 0
        %1076 = vmatprep.subr.bf16.mxu0 0
        %1077 = vmatpush1.bf16.msra.mxu0 0
        %1078 = vmatprep.subr.bf16.mxu0 0
        %1079 = vmatpush1.bf16.msra.mxu0 0
        %1080 = vmatprep.subr.bf16.mxu0 0
        %1081 = vmatpush1.bf16.msra.mxu0 0
        %1082 = vmatprep.subr.bf16.mxu0 0
        %1083 = vmatpush1.bf16.msra.mxu0 0
        %1084 = vmatprep.subr.bf16.mxu0 0
        %1085 = vmatpush1.bf16.msra.mxu0 0
        %1086 = vmatprep.subr.bf16.mxu0 0
        %1087 = vmatpush1.bf16.msra.mxu0 0
        %1088 = vmatprep.subr.bf16.mxu0 0
        %1089 = vmatpush1.bf16.msra.mxu0 0
        %1090 = vmatprep.subr.bf16.mxu0 0
        %1091 = vmatpush1.bf16.msra.mxu0 0
        %1092 = vmatprep.subr.bf16.mxu0 0
        %1093 = vmatpush1.bf16.msra.mxu0 0
        %1094 = vmatprep.subr.bf16.mxu0 0
        %1095 = vmatpush1.bf16.msra.mxu0 0
        %1096 = vmatprep.subr.bf16.mxu0 0
        %1097 = vmatpush1.bf16.msra.mxu0 0
        %1098 = vmatprep.mubr.bf16.mxu0 0
        %1099 = vmatmul.mubr.bf16.gmra.mrb[0].mxu0 %v601
        %v1100 = vpop.f32.mrb[0].mxu0
        %v1101 = vadd.f32 0.0, %v1100
        %v1102 = vpop.f32.mrb[0].mxu0
        %v1103 = vpop.f32.mrb[0].mxu0
        %v1104 = vpop.f32.mrb[0].mxu0
        %1105 = vdwg.mxu0
        %v1106 = vrcp.pop %v1101
        %v1107 = vmul.f32 0.12500001, %v1106
        %1109 = vset.pattern.permute.xlu0 0
        %1110 = vperm.xlu0 %1109, %v1107
        %v1111 = vpop.permute.xlu0 %1110
        %v1113 = vmul.f32 %v1111, %v453
        %v1114 = vpack.c.bf16 %v1113, %v1113
        %v1115 = vmul.f32 %v1061, 8.0
        %1117 = vrot.lane.b32.xlu0 %v1114, 112
        %v1118 = vpop.permute.xlu0 %1117
        %v1120 = vsel %vm537, %v1118, 0
        %1122 = vmatprep.subr.bf16.mxu0 0
        %1123 = vmatpush1.bf16.msra.mxu0 %v1120
        %1124 = vmatprep.subr.bf16.mxu0 0
        %1125 = vmatpush1.bf16.msra.mxu0 0
        %1126 = vmatprep.subr.bf16.mxu0 0
        %1127 = vmatpush1.bf16.msra.mxu0 0
        %1128 = vmatprep.subr.bf16.mxu0 0
        %1129 = vmatpush1.bf16.msra.mxu0 0
        %1130 = vmatprep.subr.bf16.mxu0 0
        %1131 = vmatpush1.bf16.msra.mxu0 0
        %1132 = vmatprep.subr.bf16.mxu0 0
        %1133 = vmatpush1.bf16.msra.mxu0 0
        %1134 = vmatprep.subr.bf16.mxu0 0
        %1135 = vmatpush1.bf16.msra.mxu0 0
        %1136 = vmatprep.subr.bf16.mxu0 0
        %1137 = vmatpush1.bf16.msra.mxu0 0
        %1138 = vmatprep.subr.bf16.mxu0 0
        %1139 = vmatpush1.bf16.msra.mxu0 0
        %1140 = vmatprep.subr.bf16.mxu0 0
        %1141 = vmatpush1.bf16.msra.mxu0 0
        %1142 = vmatprep.subr.bf16.mxu0 0
        %1143 = vmatpush1.bf16.msra.mxu0 0
        %1144 = vmatprep.subr.bf16.mxu0 0
        %1145 = vmatpush1.bf16.msra.mxu0 0
        %1146 = vmatprep.subr.bf16.mxu0 0
        %1147 = vmatpush1.bf16.msra.mxu0 0
        %1148 = vmatprep.subr.bf16.mxu0 0
        %1149 = vmatpush1.bf16.msra.mxu0 0
        %1150 = vmatprep.subr.bf16.mxu0 0
        %1151 = vmatpush1.bf16.msra.mxu0 0
        %1152 = vmatprep.subr.bf16.mxu0 0
        %1153 = vmatpush1.bf16.msra.mxu0 0
        %1154 = vmatprep.mubr.bf16.mxu0 0
        %1155 = vmatmul.mubr.bf16.gmra.mrb[0].mxu0 %v535
        %v1156 = vpop.f32.mrb[0].mxu0
        %v1157 = vadd.f32 0.0, %v1156
        %v1158 = vpop.f32.mrb[0].mxu0
        %v1159 = vpop.f32.mrb[0].mxu0
        %v1160 = vpop.f32.mrb[0].mxu0
        %1161 = vdwg.mxu0
        %1163 = vset.pattern.permute.xlu0 0
        %1164 = vperm.xlu0 %1163, %v1115
        %v1165 = vpop.permute.xlu0 %1164
        %v1167 = vmul.f32 %v1165, %v1157
        %v1168 = vld [vmem:[#allocation3] sm:$0xff]
        %v1169 = vpack.c.bf16 %v1167, %v1167
        %v1170 = vld [vmem:[%s336] sm:$0xf]
        %v1172 = vsel %vm466, %v1169, 0
        %v1175 = vsel %vm537, %v1170, 0
        %1177 = vmatprep.subr.bf16.mxu0 0
        %1178 = vmatpush1.bf16.msra.mxu0 %v1175
        %1179 = vmatprep.subr.bf16.mxu0 0
        %1180 = vmatpush1.bf16.msra.mxu0 0
        %1181 = vmatprep.subr.bf16.mxu0 0
        %1182 = vmatpush1.bf16.msra.mxu0 0
        %1183 = vmatprep.subr.bf16.mxu0 0
        %1184 = vmatpush1.bf16.msra.mxu0 0
        %1185 = vmatprep.subr.bf16.mxu0 0
        %1186 = vmatpush1.bf16.msra.mxu0 0
        %1187 = vmatprep.subr.bf16.mxu0 0
        %1188 = vmatpush1.bf16.msra.mxu0 0
        %1189 = vmatprep.subr.bf16.mxu0 0
        %1190 = vmatpush1.bf16.msra.mxu0 0
        %1191 = vmatprep.subr.bf16.mxu0 0
        %1192 = vmatpush1.bf16.msra.mxu0 0
        %1193 = vmatprep.subr.bf16.mxu0 0
        %1194 = vmatpush1.bf16.msra.mxu0 0
        %1195 = vmatprep.subr.bf16.mxu0 0
        %1196 = vmatpush1.bf16.msra.mxu0 0
        %1197 = vmatprep.subr.bf16.mxu0 0
        %1198 = vmatpush1.bf16.msra.mxu0 0
        %1199 = vmatprep.subr.bf16.mxu0 0
        %1200 = vmatpush1.bf16.msra.mxu0 0
        %1201 = vmatprep.subr.bf16.mxu0 0
        %1202 = vmatpush1.bf16.msra.mxu0 0
        %1203 = vmatprep.subr.bf16.mxu0 0
        %1204 = vmatpush1.bf16.msra.mxu0 0
        %1205 = vmatprep.subr.bf16.mxu0 0
        %1206 = vmatpush1.bf16.msra.mxu0 0
        %1207 = vmatprep.subr.bf16.mxu0 0
        %1208 = vmatpush1.bf16.msra.mxu0 0
        %1209 = vmatprep.mubr.bf16.mxu0 0
        %1210 = vmatmul.mubr.bf16.gmra.mrb[0].mxu0 %v1172
        %v1211 = vpop.f32.mrb[0].mxu0
        %v1212 = vadd.f32 0.0, %v1211
        %v1213 = vpop.f32.mrb[0].mxu0
        %v1214 = vpop.f32.mrb[0].mxu0
        %v1215 = vpop.f32.mrb[0].mxu0
        %1216 = vdwg.mxu0
        %v1217 = vadd.f32 %v1168, %v1212
        %vm1218 = vcmask 261120
        %1219 = vst.msk [vmem:[#allocation3] sm:$0xff] %vm1218, %v1217
        %p1220 = scmp.eq.s32.totalorder %s26, 3
        // Predicated region
        $region53: #{causal_self_attention_after_ln.1} parent=47 // pred_check
          %p1221 = pneg %p1220
        $region54: #{causal_self_attention_after_ln.1} parent=47 // pred_check_branch
          %1223 = sbr.rel (%p1221) target = $region56
        $region55: #{causal_self_attention_after_ln.1} parent=47 // pred_region
          %v1224 = vld [vmem:[#allocation3] sm:$0xff]
          %v1225 = vld [vmem:[%s6] sm:$0x1]
          %v1227 = vlaneseq
          %v1228 = vshrl.u32 %v1227, 7
          %v1229 = vsub.s32 0, %v1228
          %v1230 = vrot.slane %v1225, %v1229
          %v1232 = vadd.f32 %v1224, %v1230
          %1233 = vst.msk [vmem:[%s320] sm:$0xff] %vm1218, %v1232
        $region56: #{causal_self_attention_after_ln.1} parent=47 // pred_fallthru
          _
        %s1234 = sand.u32 %s208, 1
        %s1235 = scalar_lea.sflag [#allocation5], %s1234
        %s1236 = sand.u32 %s208, 1
        %s1237 = smul.addr %s1236, 8
        %s1238 = scalar_lea.vmem [#allocation4], %s1237
        // Predicated region
        $region57: #{causal_self_attention_after_ln.1} parent=47 // pred_check
          %p1239 = pneg %p218
        $region58: #{causal_self_attention_after_ln.1} parent=47 // pred_check_branch
          %1241 = sbr.rel (%p1239) target = $region60
        $region59: #{causal_self_attention_after_ln.1} parent=47 // pred_region
          %s1243 = ssub.s32 128, 128
          %1244 = vsyncadd %s1235, %s1243
          %s1245 = smul.addr %s25, 128
          %s1246 = scalar_lea.hbm %s7, %s1245
          %s1248 = sshll.u32 %s1238, 4
          %s1249 = int_to_ptr.vmem [resolvable:$true] %s1248
          %1251 = dma.vmem_to_hbm [thread:$0]  %s1249, 128, %s1246, %s1235
        $region60: #{causal_self_attention_after_ln.1} parent=47 // pred_fallthru
          _
      $region48: #{causal_self_attention_after_ln.1} parent=5 // pred_fallthru
        _
      %p1252 = scmp.le.s32.totalorder 2, %s16
      // Predicated region
      $region61: #{causal_self_attention_after_ln.1} parent=5 // pred_check
        %p1253 = pneg %p1252
      $region62: #{causal_self_attention_after_ln.1} parent=5 // pred_check_branch
        %1255 = sbr.rel (%p1253) target = $region64
      $region63: #{causal_self_attention_after_ln.1} parent=5 // pred_region
        %s1256 = ssub.s32 %s16, 2
        // Predicated region
        $region65: #{causal_self_attention_after_ln.1} parent=63 // pred_check
          %p1257 = pneg %p224
        $region66: #{causal_self_attention_after_ln.1} parent=63 // pred_check_branch
          %1259 = sbr.rel (%p1257) target = $region68
        $region67: #{causal_self_attention_after_ln.1} parent=63 // pred_region
          %s1260 = sand.u32 %s209, 1
          %s1261 = scalar_lea.sflag [#allocation5], %s1260
          %s1262 = sand.u32 %s209, 1
          %s1263 = smul.addr %s1262, 8
          %s1264 = scalar_lea.vmem [#allocation4], %s1263
          %1265 = dma.done %s1261, 128
        $region68: #{causal_self_attention_after_ln.1} parent=63 // pred_fallthru
          _
      $region64: #{causal_self_attention_after_ln.1} parent=5 // pred_fallthru
        _
    $region6: #{causal_self_attention_after_ln.1} parent=1 // loop_footer
      %s20 = sadd.s32 1, %s16
    $region7: #{causal_self_attention_after_ln.1} parent=1 // loop_footer_branch
      %15 = sbr.rel target = $region3
    $region8: #{causal_self_attention_after_ln.1} parent=1 // loop_exit
      _
    %1266 = vsyncpa [#allocation5], 1
    %s1267 = scalar_lea.sflag [#allocation5], 1
    %1268 = vsyncpa %s1267, 1

</llo_original>
